<compile_context>
chip_gen: v7x
topology: tpu7x:2x2x1
jax: 0.10.0
libtpu: 0.0.40
codegen_flags: <defaults>
</compile_context>

<pallas_src>
import functools
import math

import jax
import jax.numpy as jnp
from jax.experimental import pallas as pl
from jax.experimental.pallas import tpu as pltpu


def cross_gat_kernel(
    x_ref,                          # (TB, MD)          bf16 flattened input tile
    wqkv_ref, bqkv_ref,             # (MD, 3MD) bf16, (1, 3MD) f32  fused block-diag Q|K|V
    bsum_ref,                       # (MD, MD)  f32     block-ones group sum/broadcast matrix
    wm_ref, bm_ref,                 # (MD, MD)  bf16, (1, MD) f32   message proj (x0.5 folded)
    bn1_scale_ref, bn1_shift_ref,   # (1, MD)   f32     BatchNorm1d(M) affine, lane-expanded
    wp_ref, bp_ref,                 # (MD, D)   bf16, (1, D) f32    proj w/ BatchNorm1d(D) folded
    wc_ref, bc_ref,                 # (D, Cp)   bf16, (1, Cp) f32   classifier, lane-padded
    out_ref,                        # (TB, Cp)  f32
    *, modal_num, feature_dim,
):
    M, D = modal_num, feature_dim
    MD = M * D
    x = x_ref[...]                                                     # (TB, MD) bf16

    # ---- fused Q/K/V projection: ONE full-width bf16 MXU matmul -------------
    qkv = jnp.dot(x, wqkv_ref[...], preferred_element_type=jnp.float32) + bqkv_ref[...]
    q = qkv[:, :MD]                 # 1/sqrt(D) already folded into Q weight/bias
    k = qkv[:, MD:2 * MD]
    v = qkv[:, 2 * MD:]

    # ---- cross-modality attention at full 128-lane width --------------------
    # For offset o, the XLU roll aligns modality (i - o) mod M with q's lane
    # group i; o = 1..M-1 covers exactly the off-diagonal pairs (the -1e9
    # masked diagonal softmaxes to exactly 0, so it is simply excluded).
    # q*k_roll lane products are reduced within each modality group AND
    # broadcast back to full width in one (MD, MD) block-ones MXU matmul, so
    # the softmax and the p*v accumulation are all full-width VPU/EUP work.
    s_full, v_roll = [], []
    for o in range(1, M):
        k_o = pltpu.roll(k, shift=o * D, axis=1)
        v_roll.append(pltpu.roll(v, shift=o * D, axis=1))
        s_full.append(jnp.dot(q * k_o, bsum_ref[...],
                              preferred_element_type=jnp.float32))      # (TB, MD)

    m_max = s_full[0]
    for t in s_full[1:]:
        m_max = jnp.maximum(m_max, t)
    e = [jnp.exp(t - m_max) for t in s_full]                            # EUP slot
    denom = e[0]
    for t in e[1:]:
        denom = denom + t
    inv = pl.reciprocal(denom, approx=False)    # exact; bf16 matmuls dominate the error budget

    att = (e[0] * inv) * v_roll[0]
    for t, vr in zip(e[1:], v_roll[1:]):
        att = att + (t * inv) * vr                                      # (TB, MD)

    # ---- message projection (0.5 folded) + residual + BN1 + ReLU ------------
    msg = jnp.dot(att.astype(wm_ref.dtype), wm_ref[...],
                  preferred_element_type=jnp.float32) + bm_ref[...]
    out = msg + x.astype(jnp.float32)
    out = out * bn1_scale_ref[...] + bn1_shift_ref[...]
    out = jnp.maximum(out, 0.0)                                         # Dropout = identity

    # ---- proj Linear(MD, D) with BatchNorm1d(D) folded, then ReLU -----------
    h = jnp.dot(out.astype(wp_ref.dtype), wp_ref[...],
                preferred_element_type=jnp.float32) + bp_ref[...]
    h = jnp.maximum(h, 0.0)                                             # Dropout = identity

    # ---- classifier (lane-dense padded output, unmasked stores) -------------
    logits = jnp.dot(h.astype(wc_ref.dtype), wc_ref[...],
                     preferred_element_type=jnp.float32) + bc_ref[...]
    out_ref[...] = logits.astype(out_ref.dtype)


def _round_up(n, m):
    return (n + m - 1) // m * m


def _block_diag(blocks):
    n = len(blocks)
    d0, d1 = blocks[0].shape
    out = jnp.zeros((n * d0, n * d1), jnp.float32)
    for i, b in enumerate(blocks):
        out = jax.lax.dynamic_update_slice(out, b.astype(jnp.float32), (i * d0, i * d1))
    return out


def pack_params(p, modal_num, feature_dim, num_class, c_pad, eps=1e-5):
    """Pack per-modality weights into fused block-diagonal form for the
    flattened (B, M*D) layout, fold constants / inference-BN affines, and cast
    the large matmul operands to bfloat16 (biases stay f32)."""
    M, D, C = modal_num, feature_dim, num_class
    MD = M * D
    inv_sqrt_d = 1.0 / math.sqrt(D)

    # Fused Q|K|V block-diagonal weight: x(B,MD) @ (MD, 3MD) -> [q | k | v] lanes.
    wq_bd = _block_diag([p['wq'] * inv_sqrt_d] * M)            # shared Q, 1/sqrt(D) folded
    wk_bd = _block_diag([p['wk'][m] for m in range(M)])
    wv_bd = _block_diag([p['wv'][m] for m in range(M)])
    wqkv = jnp.concatenate([wq_bd, wk_bd, wv_bd], axis=1).astype(jnp.bfloat16)
    bqkv = jnp.concatenate([jnp.tile(p['bq'] * inv_sqrt_d, M),
                            p['bk'].reshape(MD),
                            p['bv'].reshape(MD)])[None, :]

    # Block-ones matrix: reduces q*k_roll products within each modality group
    # and broadcasts the score back to that group's D lanes in one MXU pass.
    bsum = jnp.kron(jnp.eye(M, dtype=jnp.float32), jnp.ones((D, D), jnp.float32))

    wm_bd = _block_diag([p['wm'][m] * 0.5 for m in range(M)]).astype(jnp.bfloat16)
    bm_f = p['bm'].reshape(1, MD)

    # BatchNorm1d(modal_num), inference (running mean=0 / var=1), lane-expanded.
    s1 = p['bn1_gamma'] / jnp.sqrt(1.0 + eps)
    bn1_scale = jnp.repeat(s1, D)[None, :]
    bn1_shift = jnp.repeat(p['bn1_beta'], D)[None, :]

    # proj Linear(M*D, D) with BatchNorm1d(D) inference affine folded (exact).
    s2 = p['bn2_gamma'] / jnp.sqrt(1.0 + eps)
    wp_f = (p['wp'] * s2[None, :]).astype(jnp.bfloat16)
    bp_f = (p['bp'] * s2 + p['bn2_beta'])[None, :]

    # Classifier, lane-padded to a multiple of 128 for unmasked stores.
    wc_p = jnp.zeros((D, c_pad), jnp.float32).at[:, :C].set(p['wc']).astype(jnp.bfloat16)
    bc_p = jnp.zeros((1, c_pad), jnp.float32).at[:, :C].set(p['bc'])

    return (wqkv, bqkv, bsum, wm_bd, bm_f, bn1_scale, bn1_shift,
            wp_f, bp_f, wc_p, bc_p)


def cross_gat_forward(X, p, *, block_b=1024):
    B, M, D = X.shape
    MD = M * D
    C = p['wc'].shape[1]
    Cp = _round_up(C, 128)

    packed = pack_params(p, M, D, C, Cp)

    # Batch tile: multiple of 8 sublanes, large to amortize per-step overhead,
    # but split into >=2 grid tiles when there is enough work so the "parallel"
    # batch axis can occupy both of v7x's TensorCores.
    tb = _round_up(min(block_b, B), 8)
    if B >= 256:
        tb = min(tb, _round_up(pl.cdiv(B, 2), 8))
    tb = max(tb, 8)
    Bp = _round_up(B, tb)

    x_flat = X.reshape(B, MD).astype(jnp.bfloat16)      # halves input HBM traffic
    if Bp != B:
        x_flat = jnp.pad(x_flat, ((0, Bp - B), (0, 0)))  # padded rows sliced off below
    grid = (Bp // tb,)

    def _const_spec(w):
        nd = w.ndim
        return pl.BlockSpec(w.shape, lambda i: (0,) * nd)   # VMEM-resident across steps

    in_specs = [pl.BlockSpec((tb, MD), lambda i: (i, 0))]
    in_specs += [_const_spec(w) for w in packed]
    out_spec = pl.BlockSpec((tb, Cp), lambda i: (i, 0))

    # Advisory cost estimate (weights counted once; they stay resident).
    matmul_flops = Bp * 2 * (MD * 3 * MD + (M - 1) * MD * MD + MD * MD + MD * D + D * Cp)
    vpu_flops = Bp * MD * (6 * (M - 1) + 8)
    weight_bytes = sum(int(w.size) * w.dtype.itemsize for w in packed)
    cost = pl.CostEstimate(
        flops=int(matmul_flops + vpu_flops),
        transcendentals=int(Bp * (M - 1) * MD),
        bytes_accessed=int(2 * Bp * MD + 4 * Bp * Cp + weight_bytes),
    )

    kernel = functools.partial(cross_gat_kernel, modal_num=M, feature_dim=D)

    out = pl.pallas_call(
        kernel,
        out_shape=jax.ShapeDtypeStruct((Bp, Cp), jnp.float32),
        grid=grid,
        in_specs=in_specs,
        out_specs=out_spec,
        compiler_params=pltpu.CompilerParams(
            dimension_semantics=("parallel",),       # batch tiles shard across TCs (v7x)
            vmem_limit_bytes=32 * 1024 * 1024,       # raises v5e's 16 MiB default; safe on v6e/v7x
        ),
        cost_estimate=cost,
    )(x_flat, *packed)

    return out[:B, :C]


def init_params(key, modal_num, feature_dim, num_class):
    """PyTorch-equivalent initialization of Cross_GAT (natural / unpacked layout)."""
    M, D, C = modal_num, feature_dim, num_class
    keys = jax.random.split(key, 4 * M + 8)
    bound = 1.0 / math.sqrt(D)

    # 4*M independent Linear(D, D), exactly as clones(nn.Linear(D, D), 4*M).
    lin_w, lin_b = [], []
    for i in range(4 * M):
        kw, kb = jax.random.split(keys[i])
        lin_w.append(jax.random.uniform(kw, (D, D), jnp.float32, -bound, bound))
        lin_b.append(jax.random.uniform(kb, (D,), jnp.float32, -bound, bound))

    # Reproduce the index pattern of Cross_GAT.forward (0*i, 1*i, 2*i, 3*i).
    wq, bq = lin_w[0], lin_b[0]
    wk = jnp.stack([lin_w[1 * i] for i in range(M)])
    bk = jnp.stack([lin_b[1 * i] for i in range(M)])
    wv = jnp.stack([lin_w[2 * i] for i in range(M)])
    bv = jnp.stack([lin_b[2 * i] for i in range(M)])
    wm = jnp.stack([lin_w[3 * i] for i in range(M)])
    bm = jnp.stack([lin_b[3 * i] for i in range(M)])

    kr = keys[4 * M:]
    bn1_gamma = jax.random.uniform(kr[0], (M,), jnp.float32, 0.5, 1.5)
    bn1_beta = jax.random.uniform(kr[1], (M,), jnp.float32, -0.5, 0.5)
    boundp = 1.0 / math.sqrt(M * D)
    wp = jax.random.uniform(kr[2], (M * D, D), jnp.float32, -boundp, boundp)
    bp = jax.random.uniform(kr[3], (D,), jnp.float32, -boundp, boundp)
    bn2_gamma = jax.random.uniform(kr[4], (D,), jnp.float32, 0.5, 1.5)
    bn2_beta = jax.random.uniform(kr[5], (D,), jnp.float32, -0.5, 0.5)
    wc = jax.random.uniform(kr[6], (D, C), jnp.float32, -bound, bound)
    bc = jax.random.uniform(kr[7], (C,), jnp.float32, -bound, bound)

    return dict(wq=wq, bq=bq, wk=wk, bk=bk, wv=wv, bv=bv, wm=wm, bm=bm,
                bn1_gamma=bn1_gamma, bn1_beta=bn1_beta,
                wp=wp, bp=bp, bn2_gamma=bn2_gamma, bn2_beta=bn2_beta,
                wc=wc, bc=bc)


def cross_gat_reference(X, p, eps=1e-5):
    """Pure-JAX f32 reference mirroring the PyTorch forward (inference mode)."""
    B, M, D = X.shape
    q = jnp.stack([X[:, m] @ p['wq'] + p['bq'] for m in range(M)], axis=1)
    k = jnp.stack([X[:, m] @ p['wk'][m] + p['bk'][m] for m in range(M)], axis=1)
    v = jnp.stack([X[:, m] @ p['wv'][m] + p['bv'][m] for m in range(M)], axis=1)
    scores = jnp.einsum('bqd,bkd->bqk', q, k) / math.sqrt(D)
    scores = jnp.where(jnp.eye(M, dtype=bool)[None], -1e9, scores)
    attn = jax.nn.softmax(scores, axis=-1)
    att = jnp.einsum('bqk,bkd->bqd', attn, v) / 2.0
    msg = jnp.stack([att[:, m] @ p['wm'][m] + p['bm'][m] for m in range(M)], axis=1)
    out = msg + X
    s1 = p['bn1_gamma'] / jnp.sqrt(1.0 + eps)
    out = out * s1[None, :, None] + p['bn1_beta'][None, :, None]
    out = jnp.maximum(out, 0.0)
    h = out.reshape(B, M * D) @ p['wp'] + p['bp']
    s2 = p['bn2_gamma'] / jnp.sqrt(1.0 + eps)
    h = h * s2[None, :] + p['bn2_beta'][None, :]
    h = jnp.maximum(h, 0.0)
    return h @ p['wc'] + p['bc']


if __name__ == "__main__":
    B, MODAL, FEAT, NCLASS = 256, 4, 32, 8
    key = jax.random.PRNGKey(0)
    kx, kp = jax.random.split(key)
    X = jax.random.normal(kx, (B, MODAL, FEAT), jnp.float32)
    params = init_params(kp, MODAL, FEAT, NCLASS)

    # Default tiling -> 2 batch tiles of 128 rows (exercises the pipelined,
    # megacore-shardable grid).
    fwd = jax.jit(cross_gat_forward)
    out = jax.block_until_ready(fwd(X, params))

    ref = cross_gat_reference(X, params)
    assert out.shape == (B, NCLASS), out.shape
    # bf16 MXU operands (per perf review) dominate the deviation from the
    # pure-f32 reference; 4e-2 comfortably bounds the stacked quantization.
    max_err = float(jnp.max(jnp.abs(out - ref)))
    assert jnp.allclose(out, ref, atol=4e-2, rtol=4e-2), max_err
    print("KERNEL_OK")
</pallas_src>

<mosaic_0001>
module attributes {stable_mosaic.version = 11 : i64} {
  func.func @cross_gat_kernel(%arg0: i32, %arg1: memref<128x128xbf16, #tpu.memory_space<vmem>>, %arg2: memref<128x384xbf16, #tpu.memory_space<vmem>>, %arg3: memref<1x384xf32, #tpu.memory_space<vmem>>, %arg4: memref<128x128xf32, #tpu.memory_space<vmem>>, %arg5: memref<128x128xbf16, #tpu.memory_space<vmem>>, %arg6: memref<1x128xf32, #tpu.memory_space<vmem>>, %arg7: memref<1x128xf32, #tpu.memory_space<vmem>>, %arg8: memref<1x128xf32, #tpu.memory_space<vmem>>, %arg9: memref<128x32xbf16, #tpu.memory_space<vmem>>, %arg10: memref<1x32xf32, #tpu.memory_space<vmem>>, %arg11: memref<32x128xbf16, #tpu.memory_space<vmem>>, %arg12: memref<1x128xf32, #tpu.memory_space<vmem>>, %arg13: memref<128x128xf32, #tpu.memory_space<vmem>>) attributes {dimension_semantics = [#tpu.dimension_semantics<parallel>], iteration_bounds = array<i64: 2>, scalar_prefetch = 0 : i64, scratch_operands = 0 : i64, tpu.core_type = #tpu.core_type<tc>, window_params = [{transform_indices = @transform_0, window_bounds = array<i64: 128, 128>}, {pipeline_mode = #tpu.pipeline_mode<synchronous>, transform_indices = @transform_1, window_bounds = array<i64: 128, 384>}, {pipeline_mode = #tpu.pipeline_mode<synchronous>, transform_indices = @transform_2, window_bounds = array<i64: 1, 384>}, {pipeline_mode = #tpu.pipeline_mode<synchronous>, transform_indices = @transform_3, window_bounds = array<i64: 128, 128>}, {pipeline_mode = #tpu.pipeline_mode<synchronous>, transform_indices = @transform_4, window_bounds = array<i64: 128, 128>}, {pipeline_mode = #tpu.pipeline_mode<synchronous>, transform_indices = @transform_5, window_bounds = array<i64: 1, 128>}, {pipeline_mode = #tpu.pipeline_mode<synchronous>, transform_indices = @transform_6, window_bounds = array<i64: 1, 128>}, {pipeline_mode = #tpu.pipeline_mode<synchronous>, transform_indices = @transform_7, window_bounds = array<i64: 1, 128>}, {pipeline_mode = #tpu.pipeline_mode<synchronous>, transform_indices = @transform_8, window_bounds = array<i64: 128, 32>}, {pipeline_mode = #tpu.pipeline_mode<synchronous>, transform_indices = @transform_9, window_bounds = array<i64: 1, 32>}, {pipeline_mode = #tpu.pipeline_mode<synchronous>, transform_indices = @transform_10, window_bounds = array<i64: 32, 128>}, {pipeline_mode = #tpu.pipeline_mode<synchronous>, transform_indices = @transform_11, window_bounds = array<i64: 1, 128>}, {transform_indices = @transform_12, window_bounds = array<i64: 128, 128>}]} {
    %c0 = arith.constant 0 : index
    %c0_0 = arith.constant 0 : index
    %0 = vector.load %arg1[%c0, %c0_0] : memref<128x128xbf16, #tpu.memory_space<vmem>>, vector<128x128xbf16>
    %c0_1 = arith.constant 0 : index
    %c0_2 = arith.constant 0 : index
    %1 = vector.load %arg2[%c0_1, %c0_2] : memref<128x384xbf16, #tpu.memory_space<vmem>>, vector<128x384xbf16>
    %cst = arith.constant dense<0.000000e+00> : vector<128x384xf32>
    %2 = tpu.matmul %0, %1, %cst {dimension_numbers = #tpu.dot_dimension_numbers<[1], [0], [0], [1], [0, 0, 1, 1], [], []>} : vector<128x128xbf16>, vector<128x384xbf16>, vector<128x384xf32> -> vector<128x384xf32>
    %c0_3 = arith.constant 0 : index
    %c0_4 = arith.constant 0 : index
    %3 = vector.load %arg3[%c0_3, %c0_4] : memref<1x384xf32, #tpu.memory_space<vmem>>, vector<1x384xf32>
    %4 = vector.broadcast %3 : vector<1x384xf32> to vector<128x384xf32>
    %5 = arith.addf %2, %4 : vector<128x384xf32>
    %6 = vector.extract_strided_slice %5 {offsets = [0, 0], sizes = [128, 128], strides = [1, 1]} : vector<128x384xf32> to vector<128x128xf32>
    %7 = vector.extract_strided_slice %5 {offsets = [0, 128], sizes = [128, 128], strides = [1, 1]} : vector<128x384xf32> to vector<128x128xf32>
    %8 = vector.extract_strided_slice %5 {offsets = [0, 256], sizes = [128, 128], strides = [1, 1]} : vector<128x384xf32> to vector<128x128xf32>
    %c32_i32 = arith.constant 32 : i32
    %9 = tpu.dynamic_rotate %7 by %c32_i32 dim 1 : vector<128x128xf32>, i32 -> vector<128x128xf32>
    %c32_i32_5 = arith.constant 32 : i32
    %10 = tpu.dynamic_rotate %8 by %c32_i32_5 dim 1 : vector<128x128xf32>, i32 -> vector<128x128xf32>
    %11 = arith.mulf %6, %9 : vector<128x128xf32>
    %c0_6 = arith.constant 0 : index
    %c0_7 = arith.constant 0 : index
    %12 = vector.load %arg4[%c0_6, %c0_7] : memref<128x128xf32, #tpu.memory_space<vmem>>, vector<128x128xf32>
    %cst_8 = arith.constant dense<0.000000e+00> : vector<128x128xf32>
    %13 = tpu.matmul %11, %12, %cst_8 {dimension_numbers = #tpu.dot_dimension_numbers<[1], [0], [0], [1], [0, 0, 1, 1], [], []>} : vector<128x128xf32>, vector<128x128xf32>, vector<128x128xf32> -> vector<128x128xf32>
    %c64_i32 = arith.constant 64 : i32
    %14 = tpu.dynamic_rotate %7 by %c64_i32 dim 1 : vector<128x128xf32>, i32 -> vector<128x128xf32>
    %c64_i32_9 = arith.constant 64 : i32
    %15 = tpu.dynamic_rotate %8 by %c64_i32_9 dim 1 : vector<128x128xf32>, i32 -> vector<128x128xf32>
    %16 = arith.mulf %6, %14 : vector<128x128xf32>
    %c0_10 = arith.constant 0 : index
    %c0_11 = arith.constant 0 : index
    %17 = vector.load %arg4[%c0_10, %c0_11] : memref<128x128xf32, #tpu.memory_space<vmem>>, vector<128x128xf32>
    %cst_12 = arith.constant dense<0.000000e+00> : vector<128x128xf32>
    %18 = tpu.matmul %16, %17, %cst_12 {dimension_numbers = #tpu.dot_dimension_numbers<[1], [0], [0], [1], [0, 0, 1, 1], [], []>} : vector<128x128xf32>, vector<128x128xf32>, vector<128x128xf32> -> vector<128x128xf32>
    %c96_i32 = arith.constant 96 : i32
    %19 = tpu.dynamic_rotate %7 by %c96_i32 dim 1 : vector<128x128xf32>, i32 -> vector<128x128xf32>
    %c96_i32_13 = arith.constant 96 : i32
    %20 = tpu.dynamic_rotate %8 by %c96_i32_13 dim 1 : vector<128x128xf32>, i32 -> vector<128x128xf32>
    %21 = arith.mulf %6, %19 : vector<128x128xf32>
    %c0_14 = arith.constant 0 : index
    %c0_15 = arith.constant 0 : index
    %22 = vector.load %arg4[%c0_14, %c0_15] : memref<128x128xf32, #tpu.memory_space<vmem>>, vector<128x128xf32>
    %cst_16 = arith.constant dense<0.000000e+00> : vector<128x128xf32>
    %23 = tpu.matmul %21, %22, %cst_16 {dimension_numbers = #tpu.dot_dimension_numbers<[1], [0], [0], [1], [0, 0, 1, 1], [], []>} : vector<128x128xf32>, vector<128x128xf32>, vector<128x128xf32> -> vector<128x128xf32>
    %24 = arith.maximumf %13, %18 : vector<128x128xf32>
    %25 = arith.maximumf %24, %23 : vector<128x128xf32>
    %26 = arith.subf %13, %25 : vector<128x128xf32>
    %27 = math.exp %26 : vector<128x128xf32>
    %28 = arith.subf %18, %25 : vector<128x128xf32>
    %29 = math.exp %28 : vector<128x128xf32>
    %30 = arith.subf %23, %25 : vector<128x128xf32>
    %31 = math.exp %30 : vector<128x128xf32>
    %32 = arith.addf %27, %29 : vector<128x128xf32>
    %33 = arith.addf %32, %31 : vector<128x128xf32>
    %34 = tpu.reciprocal %33 : vector<128x128xf32> -> vector<128x128xf32>
    %35 = arith.mulf %27, %34 : vector<128x128xf32>
    %36 = arith.mulf %35, %10 : vector<128x128xf32>
    %37 = arith.mulf %29, %34 : vector<128x128xf32>
    %38 = arith.mulf %37, %15 : vector<128x128xf32>
    %39 = arith.addf %36, %38 : vector<128x128xf32>
    %40 = arith.mulf %31, %34 : vector<128x128xf32>
    %41 = arith.mulf %40, %20 : vector<128x128xf32>
    %42 = arith.addf %39, %41 : vector<128x128xf32>
    %43 = arith.truncf %42 : vector<128x128xf32> to vector<128x128xbf16>
    %c0_17 = arith.constant 0 : index
    %c0_18 = arith.constant 0 : index
    %44 = vector.load %arg5[%c0_17, %c0_18] : memref<128x128xbf16, #tpu.memory_space<vmem>>, vector<128x128xbf16>
    %cst_19 = arith.constant dense<0.000000e+00> : vector<128x128xf32>
    %45 = tpu.matmul %43, %44, %cst_19 {dimension_numbers = #tpu.dot_dimension_numbers<[1], [0], [0], [1], [0, 0, 1, 1], [], []>} : vector<128x128xbf16>, vector<128x128xbf16>, vector<128x128xf32> -> vector<128x128xf32>
    %c0_20 = arith.constant 0 : index
    %c0_21 = arith.constant 0 : index
    %46 = vector.load %arg6[%c0_20, %c0_21] : memref<1x128xf32, #tpu.memory_space<vmem>>, vector<1x128xf32>
    %47 = vector.broadcast %46 : vector<1x128xf32> to vector<128x128xf32>
    %48 = arith.addf %45, %47 : vector<128x128xf32>
    %49 = arith.extf %0 : vector<128x128xbf16> to vector<128x128xf32>
    %50 = arith.addf %48, %49 : vector<128x128xf32>
    %c0_22 = arith.constant 0 : index
    %c0_23 = arith.constant 0 : index
    %51 = vector.load %arg7[%c0_22, %c0_23] : memref<1x128xf32, #tpu.memory_space<vmem>>, vector<1x128xf32>
    %52 = vector.broadcast %51 : vector<1x128xf32> to vector<128x128xf32>
    %53 = arith.mulf %50, %52 : vector<128x128xf32>
    %c0_24 = arith.constant 0 : index
    %c0_25 = arith.constant 0 : index
    %54 = vector.load %arg8[%c0_24, %c0_25] : memref<1x128xf32, #tpu.memory_space<vmem>>, vector<1x128xf32>
    %55 = vector.broadcast %54 : vector<1x128xf32> to vector<128x128xf32>
    %56 = arith.addf %53, %55 : vector<128x128xf32>
    %cst_26 = arith.constant 0.000000e+00 : f32
    %57 = vector.broadcast %cst_26 : f32 to vector<128x128xf32>
    %58 = arith.maximumf %56, %57 : vector<128x128xf32>
    %59 = arith.truncf %58 : vector<128x128xf32> to vector<128x128xbf16>
    %c0_27 = arith.constant 0 : index
    %c0_28 = arith.constant 0 : index
    %60 = vector.load %arg9[%c0_27, %c0_28] : memref<128x32xbf16, #tpu.memory_space<vmem>>, vector<128x32xbf16>
    %cst_29 = arith.constant dense<0.000000e+00> : vector<128x32xf32>
    %61 = tpu.matmul %59, %60, %cst_29 {dimension_numbers = #tpu.dot_dimension_numbers<[1], [0], [0], [1], [0, 0, 1, 1], [], []>} : vector<128x128xbf16>, vector<128x32xbf16>, vector<128x32xf32> -> vector<128x32xf32>
    %c0_30 = arith.constant 0 : index
    %c0_31 = arith.constant 0 : index
    %62 = vector.load %arg10[%c0_30, %c0_31] : memref<1x32xf32, #tpu.memory_space<vmem>>, vector<1x32xf32>
    %63 = vector.broadcast %62 : vector<1x32xf32> to vector<128x32xf32>
    %64 = arith.addf %61, %63 : vector<128x32xf32>
    %cst_32 = arith.constant 0.000000e+00 : f32
    %65 = vector.broadcast %cst_32 : f32 to vector<128x32xf32>
    %66 = arith.maximumf %64, %65 : vector<128x32xf32>
    %67 = arith.truncf %66 : vector<128x32xf32> to vector<128x32xbf16>
    %c0_33 = arith.constant 0 : index
    %c0_34 = arith.constant 0 : index
    %68 = vector.load %arg11[%c0_33, %c0_34] : memref<32x128xbf16, #tpu.memory_space<vmem>>, vector<32x128xbf16>
    %cst_35 = arith.constant dense<0.000000e+00> : vector<128x128xf32>
    %69 = tpu.matmul %67, %68, %cst_35 {dimension_numbers = #tpu.dot_dimension_numbers<[1], [0], [0], [1], [0, 0, 1, 1], [], []>} : vector<128x32xbf16>, vector<32x128xbf16>, vector<128x128xf32> -> vector<128x128xf32>
    %c0_36 = arith.constant 0 : index
    %c0_37 = arith.constant 0 : index
    %70 = vector.load %arg12[%c0_36, %c0_37] : memref<1x128xf32, #tpu.memory_space<vmem>>, vector<1x128xf32>
    %71 = vector.broadcast %70 : vector<1x128xf32> to vector<128x128xf32>
    %72 = arith.addf %69, %71 : vector<128x128xf32>
    %c0_38 = arith.constant 0 : index
    %c0_39 = arith.constant 0 : index
    %73 = vector.load %arg13[%c0_38, %c0_39] : memref<128x128xf32, #tpu.memory_space<vmem>>, vector<128x128xf32>
    tpu.vector_store %arg13[%c0_38, %c0_39], %72 {strides = array<i32>} : memref<128x128xf32, #tpu.memory_space<vmem>>, vector<128x128xf32>,
    return
  }
  func.func @transform_0(%arg0: i32) -> (i32, i32) {
    %c0_i32 = arith.constant 0 : i32
    %c0_i32_0 = arith.constant 0 : i32
    return %arg0, %c0_i32 : i32, i32
  }
  func.func @transform_1(%arg0: i32) -> (i32, i32) {
    %c0_i32 = arith.constant 0 : i32
    %c0_i32_0 = arith.constant 0 : i32
    %c0_i32_1 = arith.constant 0 : i32
    return %c0_i32, %c0_i32_0 : i32, i32
  }
  func.func @transform_2(%arg0: i32) -> (i32, i32) {
    %c0_i32 = arith.constant 0 : i32
    %c0_i32_0 = arith.constant 0 : i32
    %c0_i32_1 = arith.constant 0 : i32
    return %c0_i32, %c0_i32_0 : i32, i32
  }
  func.func @transform_3(%arg0: i32) -> (i32, i32) {
    %c0_i32 = arith.constant 0 : i32
    %c0_i32_0 = arith.constant 0 : i32
    %c0_i32_1 = arith.constant 0 : i32
    return %c0_i32, %c0_i32_0 : i32, i32
  }
  func.func @transform_4(%arg0: i32) -> (i32, i32) {
    %c0_i32 = arith.constant 0 : i32
    %c0_i32_0 = arith.constant 0 : i32
    %c0_i32_1 = arith.constant 0 : i32
    return %c0_i32, %c0_i32_0 : i32, i32
  }
  func.func @transform_5(%arg0: i32) -> (i32, i32) {
    %c0_i32 = arith.constant 0 : i32
    %c0_i32_0 = arith.constant 0 : i32
    %c0_i32_1 = arith.constant 0 : i32
    return %c0_i32, %c0_i32_0 : i32, i32
  }
  func.func @transform_6(%arg0: i32) -> (i32, i32) {
    %c0_i32 = arith.constant 0 : i32
    %c0_i32_0 = arith.constant 0 : i32
    %c0_i32_1 = arith.constant 0 : i32
    return %c0_i32, %c0_i32_0 : i32, i32
  }
  func.func @transform_7(%arg0: i32) -> (i32, i32) {
    %c0_i32 = arith.constant 0 : i32
    %c0_i32_0 = arith.constant 0 : i32
    %c0_i32_1 = arith.constant 0 : i32
    return %c0_i32, %c0_i32_0 : i32, i32
  }
  func.func @transform_8(%arg0: i32) -> (i32, i32) {
    %c0_i32 = arith.constant 0 : i32
    %c0_i32_0 = arith.constant 0 : i32
    %c0_i32_1 = arith.constant 0 : i32
    return %c0_i32, %c0_i32_0 : i32, i32
  }
  func.func @transform_9(%arg0: i32) -> (i32, i32) {
    %c0_i32 = arith.constant 0 : i32
    %c0_i32_0 = arith.constant 0 : i32
    %c0_i32_1 = arith.constant 0 : i32
    return %c0_i32, %c0_i32_0 : i32, i32
  }
  func.func @transform_10(%arg0: i32) -> (i32, i32) {
    %c0_i32 = arith.constant 0 : i32
    %c0_i32_0 = arith.constant 0 : i32
    %c0_i32_1 = arith.constant 0 : i32
    return %c0_i32, %c0_i32_0 : i32, i32
  }
  func.func @transform_11(%arg0: i32) -> (i32, i32) {
    %c0_i32 = arith.constant 0 : i32
    %c0_i32_0 = arith.constant 0 : i32
    %c0_i32_1 = arith.constant 0 : i32
    return %c0_i32, %c0_i32_0 : i32, i32
  }
  func.func @transform_12(%arg0: i32) -> (i32, i32) {
    %c0_i32 = arith.constant 0 : i32
    %c0_i32_0 = arith.constant 0 : i32
    return %arg0, %c0_i32 : i32, i32
  }
}

</mosaic_0001>

<llo_original>
// kernel: tile.8
$region0: #{tile.8}
  #allocation0 [shape = 's32[1]{0}', space=sflag, size = 0x4, scoped, tag = 'scoped memory for tile.8']
  %s0 = inlined_call_operand.vmem [shape: f32[32], index: 0, kind: input, shape index: {}]
  %s1 = inlined_call_operand.vmem [shape: f32[4,32], index: 1, kind: output, shape index: {}]
  // Predicated region
  $region2: #{tile.8} parent=0 // pred_check
    _
  $region3: #{tile.8} parent=0 // pred_check_branch
    %3 = sbr.rel (0) target = $region5
  $region4: #{tile.8} parent=0 // pred_region
    _
  $region5: #{tile.8} parent=0 // pred_fallthru
    _
  %v4 = vld [vmem:[%s0] ss:$0 sm:$0xff]
  %5 = vst [vmem:[%s1] sm:$0xf] %v4

// kernel: cross_gat_forward.1
$region0: #{cross_gat_forward.1}
  #allocation0 [shape = 'u32[]', space=smem, size = 0x4, offset = 0x4, fixed_abs, tag = 'smem constant byte address 0x4 - core index']
  #allocation1 [shape = 'u32[144,128]{1,0:T(1,128)}', space=vmem, size = 0x12000, scoped, tag = 'internal scratch']
  %s0 = inlined_call_operand.vmem [shape: bf16[256,128], index: 0, kind: input, shape index: {}]
  %s1 = inlined_call_operand.vmem [shape: bf16[128,384], index: 1, kind: input, shape index: {}]
  %s2 = inlined_call_operand.vmem [shape: f32[1,384], index: 2, kind: input, shape index: {}]
  %s3 = inlined_call_operand.vmem [shape: f32[128,128], index: 3, kind: input, shape index: {}]
  %s4 = inlined_call_operand.vmem [shape: bf16[128,128], index: 4, kind: input, shape index: {}]
  %s5 = inlined_call_operand.vmem [shape: f32[1,128], index: 5, kind: input, shape index: {}]
  %s6 = inlined_call_operand.vmem [shape: f32[1,128], index: 6, kind: input, shape index: {}]
  %s7 = inlined_call_operand.vmem [shape: f32[1,128], index: 7, kind: input, shape index: {}]
  %s8 = inlined_call_operand.vmem [shape: bf16[128,32], index: 8, kind: input, shape index: {}]
  %s9 = inlined_call_operand.vmem [shape: f32[1,32], index: 9, kind: input, shape index: {}]
  %s10 = inlined_call_operand.vmem [shape: bf16[32,128], index: 10, kind: input, shape index: {}]
  %s11 = inlined_call_operand.vmem [shape: f32[1,128], index: 11, kind: input, shape index: {}]
  %s12 = inlined_call_operand.vmem [shape: f32[256,128], index: 12, kind: output, shape index: {}]
  %s13 = sld [smem:[#allocation0]]
  $region81: #{cross_gat_forward.1} parent=0
    _
  %s15 = ssub.s32 1, %s13
  %s16 = scalar_select 0, %s15, %s13
  loop: start=0, step=1, limit=4
  $region2: #{cross_gat_forward.1} parent=0 // loop_pre_header
    _
  $region3: #{cross_gat_forward.1} parent=0 // loop_header
    %s18 = sphi 0, %s22
    %p19 = scmp.ge.s32.totalorder %s18, 4
    %s28 = sphi 0, %s30
    %s31 = sphi 0, %s28
    %s32 = sphi 0, %s31
    %s48 = sphi 0, %s32
    %s52 = sphi 0, %s52
    %s54 = sphi 0, %s52
    %s55 = sphi 0, %s54
    %s69 = sphi 0, %s55
    %s73 = sphi 0, %s73
    %s75 = sphi 0, %s73
    %s76 = sphi 0, %s75
    %s90 = sphi 0, %s76
    %s94 = sphi 0, %s94
    %s96 = sphi 0, %s94
    %s97 = sphi 0, %s96
    %s111 = sphi 0, %s97
    %s115 = sphi 0, %s115
    %s117 = sphi 0, %s115
    %s118 = sphi 0, %s117
    %s132 = sphi 0, %s118
    %s136 = sphi 0, %s136
    %s138 = sphi 0, %s136
    %s139 = sphi 0, %s138
    %s153 = sphi 0, %s139
    %s157 = sphi 0, %s157
    %s159 = sphi 0, %s157
    %s160 = sphi 0, %s159
    %s174 = sphi 0, %s160
    %s178 = sphi 0, %s178
    %s180 = sphi 0, %s178
    %s181 = sphi 0, %s180
    %s195 = sphi 0, %s181
    %s199 = sphi 0, %s199
    %s201 = sphi 0, %s199
    %s202 = sphi 0, %s201
    %s216 = sphi 0, %s202
    %s220 = sphi 0, %s220
    %s222 = sphi 0, %s220
    %s223 = sphi 0, %s222
    %s237 = sphi 0, %s223
    %s241 = sphi 0, %s241
    %s243 = sphi 0, %s241
    %s244 = sphi 0, %s243
    %s258 = sphi 0, %s244
    %s262 = sphi 0, %s262
    %s264 = sphi 0, %s262
    %s265 = sphi 0, %s264
    %s279 = sphi 0, %s265
    %s285 = sphi 0, %s287
    %s288 = sphi 0, %s285
    %s289 = sphi 0, %s288
    %s305 = sphi 0, %s289
  $region4: #{cross_gat_forward.1} parent=0 // loop_header_branch
    %21 = sbr.rel (%p19) target = $region8
  $region5: #{cross_gat_forward.1} parent=0 // loop_body
    %s23 = ssub.s32 %s18, 1
    %s24 = ssub.s32 %s18, 2
    %s25 = sadd.s32 %s18, 1
    %s26 = ssub.s32 %s18, %s25
    %p27 = scmp.eq.s32.totalorder %s26, 0
    %s29 = sadd.s32 %s28, 1
    %s30 = scalar_select %p27, %s28, %s29
    %p33 = pneg %p27
    %p34 = scmp.eq.s32.totalorder %s18, 1
    %p35 = por %p33, %p34
    %p36 = scmp.ne.s32.totalorder %s28, %s31
    %p37 = scmp.eq.s32.totalorder %s18, 0
    %p38 = por %p36, %p37
    %p39 = scmp.ne.s32.totalorder %s28, %s31
    %p40 = scmp.eq.s32.totalorder %s23, 1
    %p41 = por %p39, %p40
    %p42 = scmp.ne.s32.totalorder %s31, %s32
    %p43 = scmp.eq.s32.totalorder %s23, 0
    %p44 = por %p42, %p43
    %p45 = scmp.ne.s32.totalorder %s31, %s32
    %p46 = scmp.eq.s32.totalorder %s24, 1
    %p47 = por %p45, %p46
    %p49 = scmp.ne.s32.totalorder %s32, %s48
    %p50 = scmp.eq.s32.totalorder %s24, 0
    %p51 = por %p49, %p50
    %s53 = sadd.s32 %s52, 1
    %p56 = scmp.eq.s32.totalorder %s18, 1
    %p57 = scmp.ne.s32.totalorder %s52, %s54
    %p58 = scmp.eq.s32.totalorder %s18, 0
    %p59 = por %p57, %p58
    %p60 = scmp.ne.s32.totalorder %s52, %s54
    %p61 = scmp.eq.s32.totalorder %s23, 1
    %p62 = por %p60, %p61
    %p63 = scmp.ne.s32.totalorder %s54, %s55
    %p64 = scmp.eq.s32.totalorder %s23, 0
    %p65 = por %p63, %p64
    %p66 = scmp.ne.s32.totalorder %s54, %s55
    %p67 = scmp.eq.s32.totalorder %s24, 1
    %p68 = por %p66, %p67
    %p70 = scmp.ne.s32.totalorder %s55, %s69
    %p71 = scmp.eq.s32.totalorder %s24, 0
    %p72 = por %p70, %p71
    %s74 = sadd.s32 %s73, 1
    %p77 = scmp.eq.s32.totalorder %s18, 1
    %p78 = scmp.ne.s32.totalorder %s73, %s75
    %p79 = scmp.eq.s32.totalorder %s18, 0
    %p80 = por %p78, %p79
    %p81 = scmp.ne.s32.totalorder %s73, %s75
    %p82 = scmp.eq.s32.totalorder %s23, 1
    %p83 = por %p81, %p82
    %p84 = scmp.ne.s32.totalorder %s75, %s76
    %p85 = scmp.eq.s32.totalorder %s23, 0
    %p86 = por %p84, %p85
    %p87 = scmp.ne.s32.totalorder %s75, %s76
    %p88 = scmp.eq.s32.totalorder %s24, 1
    %p89 = por %p87, %p88
    %p91 = scmp.ne.s32.totalorder %s76, %s90
    %p92 = scmp.eq.s32.totalorder %s24, 0
    %p93 = por %p91, %p92
    %s95 = sadd.s32 %s94, 1
    %p98 = scmp.eq.s32.totalorder %s18, 1
    %p99 = scmp.ne.s32.totalorder %s94, %s96
    %p100 = scmp.eq.s32.totalorder %s18, 0
    %p101 = por %p99, %p100
    %p102 = scmp.ne.s32.totalorder %s94, %s96
    %p103 = scmp.eq.s32.totalorder %s23, 1
    %p104 = por %p102, %p103
    %p105 = scmp.ne.s32.totalorder %s96, %s97
    %p106 = scmp.eq.s32.totalorder %s23, 0
    %p107 = por %p105, %p106
    %p108 = scmp.ne.s32.totalorder %s96, %s97
    %p109 = scmp.eq.s32.totalorder %s24, 1
    %p110 = por %p108, %p109
    %p112 = scmp.ne.s32.totalorder %s97, %s111
    %p113 = scmp.eq.s32.totalorder %s24, 0
    %p114 = por %p112, %p113
    %s116 = sadd.s32 %s115, 1
    %p119 = scmp.eq.s32.totalorder %s18, 1
    %p120 = scmp.ne.s32.totalorder %s115, %s117
    %p121 = scmp.eq.s32.totalorder %s18, 0
    %p122 = por %p120, %p121
    %p123 = scmp.ne.s32.totalorder %s115, %s117
    %p124 = scmp.eq.s32.totalorder %s23, 1
    %p125 = por %p123, %p124
    %p126 = scmp.ne.s32.totalorder %s117, %s118
    %p127 = scmp.eq.s32.totalorder %s23, 0
    %p128 = por %p126, %p127
    %p129 = scmp.ne.s32.totalorder %s117, %s118
    %p130 = scmp.eq.s32.totalorder %s24, 1
    %p131 = por %p129, %p130
    %p133 = scmp.ne.s32.totalorder %s118, %s132
    %p134 = scmp.eq.s32.totalorder %s24, 0
    %p135 = por %p133, %p134
    %s137 = sadd.s32 %s136, 1
    %p140 = scmp.eq.s32.totalorder %s18, 1
    %p141 = scmp.ne.s32.totalorder %s136, %s138
    %p142 = scmp.eq.s32.totalorder %s18, 0
    %p143 = por %p141, %p142
    %p144 = scmp.ne.s32.totalorder %s136, %s138
    %p145 = scmp.eq.s32.totalorder %s23, 1
    %p146 = por %p144, %p145
    %p147 = scmp.ne.s32.totalorder %s138, %s139
    %p148 = scmp.eq.s32.totalorder %s23, 0
    %p149 = por %p147, %p148
    %p150 = scmp.ne.s32.totalorder %s138, %s139
    %p151 = scmp.eq.s32.totalorder %s24, 1
    %p152 = por %p150, %p151
    %p154 = scmp.ne.s32.totalorder %s139, %s153
    %p155 = scmp.eq.s32.totalorder %s24, 0
    %p156 = por %p154, %p155
    %s158 = sadd.s32 %s157, 1
    %p161 = scmp.eq.s32.totalorder %s18, 1
    %p162 = scmp.ne.s32.totalorder %s157, %s159
    %p163 = scmp.eq.s32.totalorder %s18, 0
    %p164 = por %p162, %p163
    %p165 = scmp.ne.s32.totalorder %s157, %s159
    %p166 = scmp.eq.s32.totalorder %s23, 1
    %p167 = por %p165, %p166
    %p168 = scmp.ne.s32.totalorder %s159, %s160
    %p169 = scmp.eq.s32.totalorder %s23, 0
    %p170 = por %p168, %p169
    %p171 = scmp.ne.s32.totalorder %s159, %s160
    %p172 = scmp.eq.s32.totalorder %s24, 1
    %p173 = por %p171, %p172
    %p175 = scmp.ne.s32.totalorder %s160, %s174
    %p176 = scmp.eq.s32.totalorder %s24, 0
    %p177 = por %p175, %p176
    %s179 = sadd.s32 %s178, 1
    %p182 = scmp.eq.s32.totalorder %s18, 1
    %p183 = scmp.ne.s32.totalorder %s178, %s180
    %p184 = scmp.eq.s32.totalorder %s18, 0
    %p185 = por %p183, %p184
    %p186 = scmp.ne.s32.totalorder %s178, %s180
    %p187 = scmp.eq.s32.totalorder %s23, 1
    %p188 = por %p186, %p187
    %p189 = scmp.ne.s32.totalorder %s180, %s181
    %p190 = scmp.eq.s32.totalorder %s23, 0
    %p191 = por %p189, %p190
    %p192 = scmp.ne.s32.totalorder %s180, %s181
    %p193 = scmp.eq.s32.totalorder %s24, 1
    %p194 = por %p192, %p193
    %p196 = scmp.ne.s32.totalorder %s181, %s195
    %p197 = scmp.eq.s32.totalorder %s24, 0
    %p198 = por %p196, %p197
    %s200 = sadd.s32 %s199, 1
    %p203 = scmp.eq.s32.totalorder %s18, 1
    %p204 = scmp.ne.s32.totalorder %s199, %s201
    %p205 = scmp.eq.s32.totalorder %s18, 0
    %p206 = por %p204, %p205
    %p207 = scmp.ne.s32.totalorder %s199, %s201
    %p208 = scmp.eq.s32.totalorder %s23, 1
    %p209 = por %p207, %p208
    %p210 = scmp.ne.s32.totalorder %s201, %s202
    %p211 = scmp.eq.s32.totalorder %s23, 0
    %p212 = por %p210, %p211
    %p213 = scmp.ne.s32.totalorder %s201, %s202
    %p214 = scmp.eq.s32.totalorder %s24, 1
    %p215 = por %p213, %p214
    %p217 = scmp.ne.s32.totalorder %s202, %s216
    %p218 = scmp.eq.s32.totalorder %s24, 0
    %p219 = por %p217, %p218
    %s221 = sadd.s32 %s220, 1
    %p224 = scmp.eq.s32.totalorder %s18, 1
    %p225 = scmp.ne.s32.totalorder %s220, %s222
    %p226 = scmp.eq.s32.totalorder %s18, 0
    %p227 = por %p225, %p226
    %p228 = scmp.ne.s32.totalorder %s220, %s222
    %p229 = scmp.eq.s32.totalorder %s23, 1
    %p230 = por %p228, %p229
    %p231 = scmp.ne.s32.totalorder %s222, %s223
    %p232 = scmp.eq.s32.totalorder %s23, 0
    %p233 = por %p231, %p232
    %p234 = scmp.ne.s32.totalorder %s222, %s223
    %p235 = scmp.eq.s32.totalorder %s24, 1
    %p236 = por %p234, %p235
    %p238 = scmp.ne.s32.totalorder %s223, %s237
    %p239 = scmp.eq.s32.totalorder %s24, 0
    %p240 = por %p238, %p239
    %s242 = sadd.s32 %s241, 1
    %p245 = scmp.eq.s32.totalorder %s18, 1
    %p246 = scmp.ne.s32.totalorder %s241, %s243
    %p247 = scmp.eq.s32.totalorder %s18, 0
    %p248 = por %p246, %p247
    %p249 = scmp.ne.s32.totalorder %s241, %s243
    %p250 = scmp.eq.s32.totalorder %s23, 1
    %p251 = por %p249, %p250
    %p252 = scmp.ne.s32.totalorder %s243, %s244
    %p253 = scmp.eq.s32.totalorder %s23, 0
    %p254 = por %p252, %p253
    %p255 = scmp.ne.s32.totalorder %s243, %s244
    %p256 = scmp.eq.s32.totalorder %s24, 1
    %p257 = por %p255, %p256
    %p259 = scmp.ne.s32.totalorder %s244, %s258
    %p260 = scmp.eq.s32.totalorder %s24, 0
    %p261 = por %p259, %p260
    %s263 = sadd.s32 %s262, 1
    %p266 = scmp.eq.s32.totalorder %s18, 1
    %p267 = scmp.ne.s32.totalorder %s262, %s264
    %p268 = scmp.eq.s32.totalorder %s18, 0
    %p269 = por %p267, %p268
    %p270 = scmp.ne.s32.totalorder %s262, %s264
    %p271 = scmp.eq.s32.totalorder %s23, 1
    %p272 = por %p270, %p271
    %p273 = scmp.ne.s32.totalorder %s264, %s265
    %p274 = scmp.eq.s32.totalorder %s23, 0
    %p275 = por %p273, %p274
    %p276 = scmp.ne.s32.totalorder %s264, %s265
    %p277 = scmp.eq.s32.totalorder %s24, 1
    %p278 = por %p276, %p277
    %p280 = scmp.ne.s32.totalorder %s265, %s279
    %p281 = scmp.eq.s32.totalorder %s24, 0
    %p282 = por %p280, %p281
    %s283 = ssub.s32 %s18, %s25
    %p284 = scmp.eq.s32.totalorder %s283, 0
    %s286 = sadd.s32 %s285, 1
    %s287 = scalar_select %p284, %s285, %s286
    %p290 = pneg %p284
    %p291 = scmp.eq.s32.totalorder %s18, 1
    %p292 = por %p290, %p291
    %p293 = scmp.ne.s32.totalorder %s285, %s288
    %p294 = scmp.eq.s32.totalorder %s18, 0
    %p295 = por %p293, %p294
    %p296 = scmp.ne.s32.totalorder %s285, %s288
    %p297 = scmp.eq.s32.totalorder %s23, 1
    %p298 = por %p296, %p297
    %p299 = scmp.ne.s32.totalorder %s288, %s289
    %p300 = scmp.eq.s32.totalorder %s23, 0
    %p301 = por %p299, %p300
    %p302 = scmp.ne.s32.totalorder %s288, %s289
    %p303 = scmp.eq.s32.totalorder %s24, 1
    %p304 = por %p302, %p303
    %p306 = scmp.ne.s32.totalorder %s289, %s305
    %p307 = scmp.eq.s32.totalorder %s24, 0
    %p308 = por %p306, %p307
    %p309 = scmp.le.s32.totalorder 1, %s18
    %p310 = scmp.lt.s32.totalorder %s18, 3
    %p311 = pnand %p309, %p310
    %p312 = pneg %p311
    // Predicated region
    $region9: #{cross_gat_forward.1} parent=5 // pred_check
      _
    $region10: #{cross_gat_forward.1} parent=5 // pred_check_branch
      %314 = sbr.rel (%p311) target = $region12
    $region11: #{cross_gat_forward.1} parent=5 // pred_region
      %s315 = ssub.s32 %s18, 1
      // Predicated region
      $region13: #{cross_gat_forward.1} parent=11 // pred_check
        %p316 = pneg %p65
      $region14: #{cross_gat_forward.1} parent=11 // pred_check_branch
        %318 = sbr.rel (%p316) target = $region16
      $region15: #{cross_gat_forward.1} parent=11 // pred_region
        _
      $region16: #{cross_gat_forward.1} parent=11 // pred_fallthru
        _
      // Predicated region
      $region17: #{cross_gat_forward.1} parent=11 // pred_check
        %p319 = pneg %p86
      $region18: #{cross_gat_forward.1} parent=11 // pred_check_branch
        %321 = sbr.rel (%p319) target = $region20
      $region19: #{cross_gat_forward.1} parent=11 // pred_region
        _
      $region20: #{cross_gat_forward.1} parent=11 // pred_fallthru
        _
      // Predicated region
      $region21: #{cross_gat_forward.1} parent=11 // pred_check
        %p322 = pneg %p107
      $region22: #{cross_gat_forward.1} parent=11 // pred_check_branch
        %324 = sbr.rel (%p322) target = $region24
      $region23: #{cross_gat_forward.1} parent=11 // pred_region
        _
      $region24: #{cross_gat_forward.1} parent=11 // pred_fallthru
        _
      // Predicated region
      $region25: #{cross_gat_forward.1} parent=11 // pred_check
        %p325 = pneg %p128
      $region26: #{cross_gat_forward.1} parent=11 // pred_check_branch
        %327 = sbr.rel (%p325) target = $region28
      $region27: #{cross_gat_forward.1} parent=11 // pred_region
        _
      $region28: #{cross_gat_forward.1} parent=11 // pred_fallthru
        _
      // Predicated region
      $region29: #{cross_gat_forward.1} parent=11 // pred_check
        %p328 = pneg %p149
      $region30: #{cross_gat_forward.1} parent=11 // pred_check_branch
        %330 = sbr.rel (%p328) target = $region32
      $region31: #{cross_gat_forward.1} parent=11 // pred_region
        _
      $region32: #{cross_gat_forward.1} parent=11 // pred_fallthru
        _
      // Predicated region
      $region33: #{cross_gat_forward.1} parent=11 // pred_check
        %p331 = pneg %p170
      $region34: #{cross_gat_forward.1} parent=11 // pred_check_branch
        %333 = sbr.rel (%p331) target = $region36
      $region35: #{cross_gat_forward.1} parent=11 // pred_region
        _
      $region36: #{cross_gat_forward.1} parent=11 // pred_fallthru
        _
      // Predicated region
      $region37: #{cross_gat_forward.1} parent=11 // pred_check
        %p334 = pneg %p191
      $region38: #{cross_gat_forward.1} parent=11 // pred_check_branch
        %336 = sbr.rel (%p334) target = $region40
      $region39: #{cross_gat_forward.1} parent=11 // pred_region
        _
      $region40: #{cross_gat_forward.1} parent=11 // pred_fallthru
        _
      // Predicated region
      $region41: #{cross_gat_forward.1} parent=11 // pred_check
        %p337 = pneg %p212
      $region42: #{cross_gat_forward.1} parent=11 // pred_check_branch
        %339 = sbr.rel (%p337) target = $region44
      $region43: #{cross_gat_forward.1} parent=11 // pred_region
        _
      $region44: #{cross_gat_forward.1} parent=11 // pred_fallthru
        _
      // Predicated region
      $region45: #{cross_gat_forward.1} parent=11 // pred_check
        %p340 = pneg %p233
      $region46: #{cross_gat_forward.1} parent=11 // pred_check_branch
        %342 = sbr.rel (%p340) target = $region48
      $region47: #{cross_gat_forward.1} parent=11 // pred_region
        _
      $region48: #{cross_gat_forward.1} parent=11 // pred_fallthru
        _
      // Predicated region
      $region49: #{cross_gat_forward.1} parent=11 // pred_check
        %p343 = pneg %p254
      $region50: #{cross_gat_forward.1} parent=11 // pred_check_branch
        %345 = sbr.rel (%p343) target = $region52
      $region51: #{cross_gat_forward.1} parent=11 // pred_region
        _
      $region52: #{cross_gat_forward.1} parent=11 // pred_fallthru
        _
      // Predicated region
      $region53: #{cross_gat_forward.1} parent=11 // pred_check
        %p346 = pneg %p275
      $region54: #{cross_gat_forward.1} parent=11 // pred_check_branch
        %348 = sbr.rel (%p346) target = $region56
      $region55: #{cross_gat_forward.1} parent=11 // pred_region
        _
      $region56: #{cross_gat_forward.1} parent=11 // pred_fallthru
        _
    $region12: #{cross_gat_forward.1} parent=5 // pred_fallthru
      _
    %p349 = scmp.lt.s32.totalorder %s18, 2
    // Predicated region
    $region57: #{cross_gat_forward.1} parent=5 // pred_check
      %p350 = pneg %p349
    $region58: #{cross_gat_forward.1} parent=5 // pred_check_branch
      %352 = sbr.rel (%p350) target = $region60
    $region59: #{cross_gat_forward.1} parent=5 // pred_region
      // Predicated region
      $region61: #{cross_gat_forward.1} parent=59 // pred_check
        %p353 = pneg %p38
      $region62: #{cross_gat_forward.1} parent=59 // pred_check_branch
        %355 = sbr.rel (%p353) target = $region64
      $region63: #{cross_gat_forward.1} parent=59 // pred_region
        %s356 = smul.u32 16, %s18
        %p357 = scmp.lt.s32.totalorder %s356, 31
        %s358 = scalar_select %p357, %s356, 31
        %s359 = smul.addr %s358, 4
        %s360 = scalar_lea.vmem %s0, %s359
        %s361 = smul.u32 16, %s18
      $region64: #{cross_gat_forward.1} parent=59 // pred_fallthru
        _
    $region60: #{cross_gat_forward.1} parent=5 // pred_fallthru
      _
    %p362 = scmp.le.s32.totalorder 1, %s18
    %p363 = scmp.lt.s32.totalorder %s18, 3
    %p364 = pnand %p362, %p363
    %p365 = pneg %p364
    // Predicated region
    $region65: #{cross_gat_forward.1} parent=5 // pred_check
      _
    $region66: #{cross_gat_forward.1} parent=5 // pred_check_branch
      %367 = sbr.rel (%p364) target = $region68
    $region67: #{cross_gat_forward.1} parent=5 // pred_region
      %s368 = ssub.s32 %s18, 1
      %s369 = smul.u32 16, %s23
      %p370 = scmp.lt.s32.totalorder %s369, 31
      %s371 = scalar_select %p370, %s369, 31
      %s372 = smul.addr %s371, 4
      %s373 = scalar_lea.vmem %s0, %s372
      %p374 = pneg %p44
      %p375 = pneg %p41
      %p376 = pneg %p65
      %p377 = pneg %p62
      %p378 = pneg %p86
      %p379 = pneg %p83
      %p380 = pneg %p107
      %p381 = pneg %p104
      %p382 = pneg %p128
      %p383 = pneg %p125
      %p384 = pneg %p149
      %p385 = pneg %p146
      %p386 = pneg %p170
      %p387 = pneg %p167
      %p388 = pneg %p191
      %p389 = pneg %p188
      %p390 = pneg %p212
      %p391 = pneg %p209
      %p392 = pneg %p233
      %p393 = pneg %p230
      %p394 = pneg %p254
      %p395 = pneg %p251
      %p396 = pneg %p275
      %p397 = pneg %p272
      %p398 = pneg %p301
      %p399 = pneg %p298
      %s400 = smul.u32 16, %s23
      %p401 = scmp.lt.s32.totalorder %s400, 31
      %s402 = scalar_select %p401, %s400, 31
      %s403 = smul.addr %s402, 8
      %s404 = scalar_lea.vmem %s12, %s403
      %s405 = smul.u32 16, %s23
      %p406 = scmp.lt.s32.totalorder %s405, 31
      %s407 = scalar_select %p406, %s405, 31
      %s408 = smul.addr %s407, 4
      %s409 = scalar_lea.vmem %s0, %s408
      %s410 = smul.u32 16, %s23
      %s411 = smul.u32 16, %s23
      %p412 = scmp.lt.s32.totalorder %s411, 31
      %s413 = scalar_select %p412, %s411, 31
      %s414 = smul.addr %s413, 8
      %s415 = scalar_lea.vmem %s12, %s414
      %s416 = smul.u32 16, %s23
      %v418 = vld [vmem:[%s409] sm:$0xf]
      %v419 = vld [vmem:[%s409 + $0x4] sm:$0xf]
      %v420 = vld [vmem:[%s409 + $0x8] sm:$0xf]
      %v421 = vld [vmem:[%s409 + $0xc] sm:$0xf]
      %v422 = vld [vmem:[%s409 + $0x10] sm:$0xf]
      %v423 = vld [vmem:[%s409 + $0x14] sm:$0xf]
      %v424 = vld [vmem:[%s409 + $0x18] sm:$0xf]
      %v425 = vld [vmem:[%s409 + $0x1c] sm:$0xf]
      %v426 = vld [vmem:[%s409 + $0x20] sm:$0xf]
      %v427 = vld [vmem:[%s409 + $0x24] sm:$0xf]
      %v428 = vld [vmem:[%s409 + $0x28] sm:$0xf]
      %v429 = vld [vmem:[%s409 + $0x2c] sm:$0xf]
      %v430 = vld [vmem:[%s409 + $0x30] sm:$0xf]
      %v431 = vld [vmem:[%s409 + $0x34] sm:$0xf]
      %v432 = vld [vmem:[%s409 + $0x38] sm:$0xf]
      %v433 = vld [vmem:[%s409 + $0x3c] sm:$0xf]
      %v434 = vld [vmem:[%s1] sm:$0xff]
      %v435 = vld [vmem:[%s1 + $0x8] sm:$0xf]
      %v436 = vld [vmem:[%s1 + $0xc] sm:$0xff]
      %v437 = vld [vmem:[%s1 + $0x14] sm:$0xf]
      %v438 = vld [vmem:[%s1 + $0x18] sm:$0xff]
      %v439 = vld [vmem:[%s1 + $0x20] sm:$0xf]
      %v440 = vld [vmem:[%s1 + $0x24] sm:$0xff]
      %v441 = vld [vmem:[%s1 + $0x2c] sm:$0xf]
      %v442 = vld [vmem:[%s1 + $0x30] sm:$0xff]
      %v443 = vld [vmem:[%s1 + $0x38] sm:$0xf]
      %v444 = vld [vmem:[%s1 + $0x3c] sm:$0xff]
      %v445 = vld [vmem:[%s1 + $0x44] sm:$0xf]
      %v446 = vld [vmem:[%s1 + $0x48] sm:$0xff]
      %v447 = vld [vmem:[%s1 + $0x50] sm:$0xf]
      %v448 = vld [vmem:[%s1 + $0x54] sm:$0xff]
      %v449 = vld [vmem:[%s1 + $0x5c] sm:$0xf]
      %v450 = vld [vmem:[%s1 + $0x60] sm:$0xff]
      %v451 = vld [vmem:[%s1 + $0x68] sm:$0xf]
      %v452 = vld [vmem:[%s1 + $0x6c] sm:$0xff]
      %v453 = vld [vmem:[%s1 + $0x74] sm:$0xf]
      %v454 = vld [vmem:[%s1 + $0x78] sm:$0xff]
      %v455 = vld [vmem:[%s1 + $0x80] sm:$0xf]
      %v456 = vld [vmem:[%s1 + $0x84] sm:$0xff]
      %v457 = vld [vmem:[%s1 + $0x8c] sm:$0xf]
      %v458 = vld [vmem:[%s1 + $0x90] sm:$0xff]
      %v459 = vld [vmem:[%s1 + $0x98] sm:$0xf]
      %v460 = vld [vmem:[%s1 + $0x9c] sm:$0xff]
      %v461 = vld [vmem:[%s1 + $0xa4] sm:$0xf]
      %v462 = vld [vmem:[%s1 + $0xa8] sm:$0xff]
      %v463 = vld [vmem:[%s1 + $0xb0] sm:$0xf]
      %v464 = vld [vmem:[%s1 + $0xb4] sm:$0xff]
      %v465 = vld [vmem:[%s1 + $0xbc] sm:$0xf]
      %v466 = vld [vmem:[%s2] sm:$0x7]
      %v468 = vlaneseq
      %v469 = vshrl.u32 %v468, 7
      %v470 = vsub.s32 0, %v469
      %v471 = vrot.slane %v466, %v470
      %v472 = vlaneseq
      %v473 = vshrl.u32 %v472, 7
      %v474 = vsub.s32 1, %v473
      %v475 = vrot.slane %v466, %v474
      %v476 = vlaneseq
      %v477 = vshrl.u32 %v476, 7
      %v478 = vsub.s32 2, %v477
      %v479 = vrot.slane %v466, %v478
      %v499 = vunpack.c.l.b16 %v418
      %v500 = vunpack.c.l.b16 %v419
      %v501 = vunpack.c.l.b16 %v420
      %v502 = vunpack.c.l.b16 %v421
      %v503 = vunpack.c.l.b16 %v422
      %v504 = vunpack.c.l.b16 %v423
      %v505 = vunpack.c.l.b16 %v424
      %v506 = vunpack.c.l.b16 %v425
      %v507 = vunpack.c.l.b16 %v426
      %v508 = vunpack.c.l.b16 %v427
      %v509 = vunpack.c.l.b16 %v428
      %v510 = vunpack.c.l.b16 %v429
      %v511 = vunpack.c.l.b16 %v430
      %v512 = vunpack.c.l.b16 %v431
      %v513 = vunpack.c.l.b16 %v432
      %v514 = vunpack.c.l.b16 %v433
      %v515 = vpack.c.b16 %v500, %v499
      %v516 = vpack.c.b16 %v502, %v501
      %v517 = vpack.c.b16 %v504, %v503
      %v518 = vpack.c.b16 %v506, %v505
      %v519 = vpack.c.b16 %v508, %v507
      %v520 = vpack.c.b16 %v510, %v509
      %v521 = vpack.c.b16 %v512, %v511
      %v522 = vpack.c.b16 %v514, %v513
      %v563 = vunpack.c.l.b16 %v434
      %v564 = vunpack.c.h.b16 %v434
      %v565 = vunpack.c.l.b16 %v435
      %v566 = vunpack.c.l.b16 %v436
      %v567 = vunpack.c.h.b16 %v436
      %v568 = vunpack.c.l.b16 %v437
      %v569 = vunpack.c.l.b16 %v438
      %v570 = vunpack.c.h.b16 %v438
      %v571 = vunpack.c.l.b16 %v439
      %v572 = vunpack.c.l.b16 %v440
      %v573 = vunpack.c.h.b16 %v440
      %v574 = vunpack.c.l.b16 %v441
      %v575 = vunpack.c.l.b16 %v442
      %v576 = vunpack.c.h.b16 %v442
      %v577 = vunpack.c.l.b16 %v443
      %v578 = vunpack.c.l.b16 %v444
      %v579 = vunpack.c.h.b16 %v444
      %v580 = vunpack.c.l.b16 %v445
      %v581 = vunpack.c.l.b16 %v446
      %v582 = vunpack.c.h.b16 %v446
      %v583 = vunpack.c.l.b16 %v447
      %v584 = vunpack.c.l.b16 %v448
      %v585 = vunpack.c.h.b16 %v448
      %v586 = vunpack.c.l.b16 %v449
      %v587 = vunpack.c.l.b16 %v450
      %v588 = vunpack.c.h.b16 %v450
      %v589 = vunpack.c.l.b16 %v451
      %v590 = vunpack.c.l.b16 %v452
      %v591 = vunpack.c.h.b16 %v452
      %v592 = vunpack.c.l.b16 %v453
      %v593 = vunpack.c.l.b16 %v454
      %v594 = vunpack.c.h.b16 %v454
      %v595 = vunpack.c.l.b16 %v455
      %v596 = vunpack.c.l.b16 %v456
      %v597 = vunpack.c.h.b16 %v456
      %v598 = vunpack.c.l.b16 %v457
      %v599 = vunpack.c.l.b16 %v458
      %v600 = vunpack.c.h.b16 %v458
      %v601 = vunpack.c.l.b16 %v459
      %v602 = vunpack.c.l.b16 %v460
      %v603 = vunpack.c.h.b16 %v460
      %v604 = vunpack.c.l.b16 %v461
      %v605 = vunpack.c.l.b16 %v462
      %v606 = vunpack.c.h.b16 %v462
      %v607 = vunpack.c.l.b16 %v463
      %v608 = vunpack.c.l.b16 %v464
      %v609 = vunpack.c.h.b16 %v464
      %v610 = vunpack.c.l.b16 %v465
      %v611 = vpack.c.b16 %v566, %v563
      %v612 = vpack.c.b16 %v567, %v564
      %v613 = vpack.c.b16 %v568, %v565
      %v614 = vpack.c.b16 %v572, %v569
      %v615 = vpack.c.b16 %v573, %v570
      %v616 = vpack.c.b16 %v574, %v571
      %v617 = vpack.c.b16 %v578, %v575
      %v618 = vpack.c.b16 %v579, %v576
      %v619 = vpack.c.b16 %v580, %v577
      %v620 = vpack.c.b16 %v584, %v581
      %v621 = vpack.c.b16 %v585, %v582
      %v622 = vpack.c.b16 %v586, %v583
      %v623 = vpack.c.b16 %v590, %v587
      %v624 = vpack.c.b16 %v591, %v588
      %v625 = vpack.c.b16 %v592, %v589
      %v626 = vpack.c.b16 %v596, %v593
      %v627 = vpack.c.b16 %v597, %v594
      %v628 = vpack.c.b16 %v598, %v595
      %v629 = vpack.c.b16 %v602, %v599
      %v630 = vpack.c.b16 %v603, %v600
      %v631 = vpack.c.b16 %v604, %v601
      %v632 = vpack.c.b16 %v608, %v605
      %v633 = vpack.c.b16 %v609, %v606
      %v634 = vpack.c.b16 %v610, %v607
      %659 = vmatprep.subr.bf16.mxu0 %v612
      %660 = vmatpush1.bf16.msra.mxu0 %v611
      %661 = vmatprep.subr.bf16.mxu0 %v615
      %662 = vmatpush1.bf16.msra.mxu0 %v614
      %663 = vmatprep.subr.bf16.mxu0 %v618
      %664 = vmatpush1.bf16.msra.mxu0 %v617
      %665 = vmatprep.subr.bf16.mxu0 %v621
      %666 = vmatpush1.bf16.msra.mxu0 %v620
      %667 = vmatprep.subr.bf16.mxu0 %v624
      %668 = vmatpush1.bf16.msra.mxu0 %v623
      %669 = vmatprep.subr.bf16.mxu0 %v627
      %670 = vmatpush1.bf16.msra.mxu0 %v626
      %671 = vmatprep.subr.bf16.mxu0 %v630
      %672 = vmatpush1.bf16.msra.mxu0 %v629
      %673 = vmatprep.subr.bf16.mxu0 %v633
      %674 = vmatpush1.bf16.msra.mxu0 %v632
      %675 = vmatprep.subr.bf16.mxu0 0
      %676 = vmatpush1.bf16.msra.mxu0 0
      %677 = vmatprep.subr.bf16.mxu0 0
      %678 = vmatpush1.bf16.msra.mxu0 0
      %679 = vmatprep.subr.bf16.mxu0 0
      %680 = vmatpush1.bf16.msra.mxu0 0
      %681 = vmatprep.subr.bf16.mxu0 0
      %682 = vmatpush1.bf16.msra.mxu0 0
      %683 = vmatprep.subr.bf16.mxu0 0
      %684 = vmatpush1.bf16.msra.mxu0 0
      %685 = vmatprep.subr.bf16.mxu0 0
      %686 = vmatpush1.bf16.msra.mxu0 0
      %687 = vmatprep.subr.bf16.mxu0 0
      %688 = vmatpush1.bf16.msra.mxu0 0
      %689 = vmatprep.subr.bf16.mxu0 0
      %690 = vmatpush1.bf16.msra.mxu0 0
      %691 = vmatprep.mubr.bf16.mxu0 0
      %692 = vmatmul.mubr.bf16.gmra.mrb[0].mxu0 %v515
      %v693 = vpop.f32.mrb[0].mxu0
      %v694 = vadd.f32 %v471, %v693
      %v695 = vpop.f32.mrb[0].mxu0
      %v696 = vadd.f32 %v475, %v695
      %v697 = vpop.f32.mrb[0].mxu0
      %v698 = vadd.f32 %v471, %v697
      %v699 = vpop.f32.mrb[0].mxu0
      %v700 = vadd.f32 %v475, %v699
      %701 = vmatprep.mubr.bf16.mxu0 0
      %702 = vmatmul.mubr.bf16.gmra.mrb[0].mxu0 %v516
      %v703 = vpop.f32.mrb[0].mxu0
      %v704 = vadd.f32 %v471, %v703
      %v705 = vpop.f32.mrb[0].mxu0
      %v706 = vadd.f32 %v475, %v705
      %v707 = vpop.f32.mrb[0].mxu0
      %v708 = vadd.f32 %v471, %v707
      %v709 = vpop.f32.mrb[0].mxu0
      %v710 = vadd.f32 %v475, %v709
      %711 = vmatprep.mubr.bf16.mxu0 0
      %712 = vmatmul.mubr.bf16.gmra.mrb[0].mxu0 %v517
      %v713 = vpop.f32.mrb[0].mxu0
      %v714 = vadd.f32 %v471, %v713
      %v715 = vpop.f32.mrb[0].mxu0
      %v716 = vadd.f32 %v475, %v715
      %v717 = vpop.f32.mrb[0].mxu0
      %v718 = vadd.f32 %v471, %v717
      %v719 = vpop.f32.mrb[0].mxu0
      %v720 = vadd.f32 %v475, %v719
      %721 = vmatprep.mubr.bf16.mxu0 0
      %722 = vmatmul.mubr.bf16.gmra.mrb[0].mxu0 %v518
      %v723 = vpop.f32.mrb[0].mxu0
      %v724 = vadd.f32 %v471, %v723
      %v725 = vpop.f32.mrb[0].mxu0
      %v726 = vadd.f32 %v475, %v725
      %v727 = vpop.f32.mrb[0].mxu0
      %v728 = vadd.f32 %v471, %v727
      %v729 = vpop.f32.mrb[0].mxu0
      %v730 = vadd.f32 %v475, %v729
      %731 = vmatprep.mubr.bf16.mxu0 0
      %732 = vmatmul.mubr.bf16.gmra.mrb[0].mxu0 %v519
      %v733 = vpop.f32.mrb[0].mxu0
      %v734 = vadd.f32 %v471, %v733
      %v735 = vpop.f32.mrb[0].mxu0
      %v736 = vadd.f32 %v475, %v735
      %v737 = vpop.f32.mrb[0].mxu0
      %v738 = vadd.f32 %v471, %v737
      %v739 = vpop.f32.mrb[0].mxu0
      %v740 = vadd.f32 %v475, %v739
      %741 = vmatprep.mubr.bf16.mxu0 0
      %742 = vmatmul.mubr.bf16.gmra.mrb[0].mxu0 %v520
      %v743 = vpop.f32.mrb[0].mxu0
      %v744 = vadd.f32 %v471, %v743
      %v745 = vpop.f32.mrb[0].mxu0
      %v746 = vadd.f32 %v475, %v745
      %v747 = vpop.f32.mrb[0].mxu0
      %v748 = vadd.f32 %v471, %v747
      %v749 = vpop.f32.mrb[0].mxu0
      %v750 = vadd.f32 %v475, %v749
      %751 = vmatprep.mubr.bf16.mxu0 0
      %752 = vmatmul.mubr.bf16.gmra.mrb[0].mxu0 %v521
      %v753 = vpop.f32.mrb[0].mxu0
      %v754 = vadd.f32 %v471, %v753
      %v755 = vpop.f32.mrb[0].mxu0
      %v756 = vadd.f32 %v475, %v755
      %v757 = vpop.f32.mrb[0].mxu0
      %v758 = vadd.f32 %v471, %v757
      %v759 = vpop.f32.mrb[0].mxu0
      %v760 = vadd.f32 %v475, %v759
      %761 = vmatprep.mubr.bf16.mxu0 0
      %762 = vmatmul.mubr.bf16.gmra.mrb[0].mxu0 %v522
      %v763 = vpop.f32.mrb[0].mxu0
      %v764 = vadd.f32 %v471, %v763
      %v765 = vpop.f32.mrb[0].mxu0
      %v766 = vadd.f32 %v475, %v765
      %v767 = vpop.f32.mrb[0].mxu0
      %v768 = vadd.f32 %v471, %v767
      %v769 = vpop.f32.mrb[0].mxu0
      %v770 = vadd.f32 %v475, %v769
      %771 = vdwg.mxu0
      %772 = vmatprep.subr.bf16.mxu0 0
      %773 = vmatpush1.bf16.msra.mxu0 %v613
      %774 = vmatprep.subr.bf16.mxu0 0
      %775 = vmatpush1.bf16.msra.mxu0 %v616
      %776 = vmatprep.subr.bf16.mxu0 0
      %777 = vmatpush1.bf16.msra.mxu0 %v619
      %778 = vmatprep.subr.bf16.mxu0 0
      %779 = vmatpush1.bf16.msra.mxu0 %v622
      %780 = vmatprep.subr.bf16.mxu0 0
      %781 = vmatpush1.bf16.msra.mxu0 %v625
      %782 = vmatprep.subr.bf16.mxu0 0
      %783 = vmatpush1.bf16.msra.mxu0 %v628
      %784 = vmatprep.subr.bf16.mxu0 0
      %785 = vmatpush1.bf16.msra.mxu0 %v631
      %786 = vmatprep.subr.bf16.mxu0 0
      %787 = vmatpush1.bf16.msra.mxu0 %v634
      %788 = vmatprep.subr.bf16.mxu0 0
      %789 = vmatpush1.bf16.msra.mxu0 0
      %790 = vmatprep.subr.bf16.mxu0 0
      %791 = vmatpush1.bf16.msra.mxu0 0
      %792 = vmatprep.subr.bf16.mxu0 0
      %793 = vmatpush1.bf16.msra.mxu0 0
      %794 = vmatprep.subr.bf16.mxu0 0
      %795 = vmatpush1.bf16.msra.mxu0 0
      %796 = vmatprep.subr.bf16.mxu0 0
      %797 = vmatpush1.bf16.msra.mxu0 0
      %798 = vmatprep.subr.bf16.mxu0 0
      %799 = vmatpush1.bf16.msra.mxu0 0
      %800 = vmatprep.subr.bf16.mxu0 0
      %801 = vmatpush1.bf16.msra.mxu0 0
      %802 = vmatprep.subr.bf16.mxu0 0
      %803 = vmatpush1.bf16.msra.mxu0 0
      %804 = vmatprep.mubr.bf16.mxu0 0
      %805 = vmatmul.mubr.bf16.gmra.mrb[0].mxu0 %v515
      %v806 = vpop.f32.mrb[0].mxu0
      %v807 = vadd.f32 %v479, %v806
      %v808 = vpop.f32.mrb[0].mxu0
      %v809 = vpop.f32.mrb[0].mxu0
      %v810 = vadd.f32 %v479, %v809
      %v811 = vpop.f32.mrb[0].mxu0
      %812 = vmatprep.mubr.bf16.mxu0 0
      %813 = vmatmul.mubr.bf16.gmra.mrb[0].mxu0 %v516
      %v814 = vpop.f32.mrb[0].mxu0
      %v815 = vadd.f32 %v479, %v814
      %v816 = vpop.f32.mrb[0].mxu0
      %v817 = vpop.f32.mrb[0].mxu0
      %v818 = vadd.f32 %v479, %v817
      %v819 = vpop.f32.mrb[0].mxu0
      %820 = vmatprep.mubr.bf16.mxu0 0
      %821 = vmatmul.mubr.bf16.gmra.mrb[0].mxu0 %v517
      %v822 = vpop.f32.mrb[0].mxu0
      %v823 = vadd.f32 %v479, %v822
      %v824 = vpop.f32.mrb[0].mxu0
      %v825 = vpop.f32.mrb[0].mxu0
      %v826 = vadd.f32 %v479, %v825
      %v827 = vpop.f32.mrb[0].mxu0
      %828 = vmatprep.mubr.bf16.mxu0 0
      %829 = vmatmul.mubr.bf16.gmra.mrb[0].mxu0 %v518
      %v830 = vpop.f32.mrb[0].mxu0
      %v831 = vadd.f32 %v479, %v830
      %v832 = vpop.f32.mrb[0].mxu0
      %v833 = vpop.f32.mrb[0].mxu0
      %v834 = vadd.f32 %v479, %v833
      %v835 = vpop.f32.mrb[0].mxu0
      %836 = vmatprep.mubr.bf16.mxu0 0
      %837 = vmatmul.mubr.bf16.gmra.mrb[0].mxu0 %v519
      %v838 = vpop.f32.mrb[0].mxu0
      %v839 = vadd.f32 %v479, %v838
      %v840 = vpop.f32.mrb[0].mxu0
      %v841 = vpop.f32.mrb[0].mxu0
      %v842 = vadd.f32 %v479, %v841
      %v843 = vpop.f32.mrb[0].mxu0
      %844 = vmatprep.mubr.bf16.mxu0 0
      %845 = vmatmul.mubr.bf16.gmra.mrb[0].mxu0 %v520
      %v846 = vpop.f32.mrb[0].mxu0
      %v847 = vadd.f32 %v479, %v846
      %v848 = vpop.f32.mrb[0].mxu0
      %v849 = vpop.f32.mrb[0].mxu0
      %v850 = vadd.f32 %v479, %v849
      %v851 = vpop.f32.mrb[0].mxu0
      %852 = vmatprep.mubr.bf16.mxu0 0
      %853 = vmatmul.mubr.bf16.gmra.mrb[0].mxu0 %v521
      %v854 = vpop.f32.mrb[0].mxu0
      %v855 = vadd.f32 %v479, %v854
      %v856 = vpop.f32.mrb[0].mxu0
      %v857 = vpop.f32.mrb[0].mxu0
      %v858 = vadd.f32 %v479, %v857
      %v859 = vpop.f32.mrb[0].mxu0
      %860 = vmatprep.mubr.bf16.mxu0 0
      %861 = vmatmul.mubr.bf16.gmra.mrb[0].mxu0 %v522
      %v862 = vpop.f32.mrb[0].mxu0
      %v863 = vadd.f32 %v479, %v862
      %v864 = vpop.f32.mrb[0].mxu0
      %v865 = vpop.f32.mrb[0].mxu0
      %v866 = vadd.f32 %v479, %v865
      %v867 = vpop.f32.mrb[0].mxu0
      %868 = vdwg.mxu0
      %869 = vrot.lane.b32.xlu0 %v696, 32
      %v870 = vpop.permute.xlu0 %869
      %871 = vrot.lane.b32.xlu0 %v700, 32
      %v872 = vpop.permute.xlu0 %871
      %873 = vrot.lane.b32.xlu0 %v706, 32
      %v874 = vpop.permute.xlu0 %873
      %875 = vrot.lane.b32.xlu0 %v710, 32
      %v876 = vpop.permute.xlu0 %875
      %877 = vrot.lane.b32.xlu0 %v716, 32
      %v878 = vpop.permute.xlu0 %877
      %879 = vrot.lane.b32.xlu0 %v720, 32
      %v880 = vpop.permute.xlu0 %879
      %881 = vrot.lane.b32.xlu0 %v726, 32
      %v882 = vpop.permute.xlu0 %881
      %883 = vrot.lane.b32.xlu0 %v730, 32
      %v884 = vpop.permute.xlu0 %883
      %885 = vrot.lane.b32.xlu0 %v736, 32
      %v886 = vpop.permute.xlu0 %885
      %887 = vrot.lane.b32.xlu0 %v740, 32
      %v888 = vpop.permute.xlu0 %887
      %889 = vrot.lane.b32.xlu0 %v746, 32
      %v890 = vpop.permute.xlu0 %889
      %891 = vrot.lane.b32.xlu0 %v750, 32
      %v892 = vpop.permute.xlu0 %891
      %893 = vrot.lane.b32.xlu0 %v756, 32
      %v894 = vpop.permute.xlu0 %893
      %895 = vrot.lane.b32.xlu0 %v760, 32
      %v896 = vpop.permute.xlu0 %895
      %897 = vrot.lane.b32.xlu0 %v766, 32
      %v898 = vpop.permute.xlu0 %897
      %899 = vrot.lane.b32.xlu0 %v770, 32
      %v900 = vpop.permute.xlu0 %899
      %901 = vrot.lane.b32.xlu0 %v807, 32
      %v902 = vpop.permute.xlu0 %901
      %903 = vrot.lane.b32.xlu0 %v810, 32
      %v904 = vpop.permute.xlu0 %903
      %905 = vrot.lane.b32.xlu0 %v815, 32
      %v906 = vpop.permute.xlu0 %905
      %907 = vrot.lane.b32.xlu0 %v818, 32
      %v908 = vpop.permute.xlu0 %907
      %909 = vrot.lane.b32.xlu0 %v823, 32
      %v910 = vpop.permute.xlu0 %909
      %911 = vrot.lane.b32.xlu0 %v826, 32
      %v912 = vpop.permute.xlu0 %911
      %913 = vrot.lane.b32.xlu0 %v831, 32
      %v914 = vpop.permute.xlu0 %913
      %915 = vrot.lane.b32.xlu0 %v834, 32
      %v916 = vpop.permute.xlu0 %915
      %917 = vrot.lane.b32.xlu0 %v839, 32
      %v918 = vpop.permute.xlu0 %917
      %919 = vrot.lane.b32.xlu0 %v842, 32
      %v920 = vpop.permute.xlu0 %919
      %921 = vrot.lane.b32.xlu0 %v847, 32
      %v922 = vpop.permute.xlu0 %921
      %923 = vrot.lane.b32.xlu0 %v850, 32
      %v924 = vpop.permute.xlu0 %923
      %925 = vrot.lane.b32.xlu0 %v855, 32
      %v926 = vpop.permute.xlu0 %925
      %927 = vrot.lane.b32.xlu0 %v858, 32
      %v928 = vpop.permute.xlu0 %927
      %929 = vrot.lane.b32.xlu0 %v863, 32
      %v930 = vpop.permute.xlu0 %929
      %931 = vrot.lane.b32.xlu0 %v866, 32
      %v932 = vpop.permute.xlu0 %931
      %v933 = vmul.f32 %v694, %v870
      %v934 = vmul.f32 %v698, %v872
      %v935 = vmul.f32 %v704, %v874
      %v936 = vmul.f32 %v708, %v876
      %v937 = vmul.f32 %v714, %v878
      %v938 = vmul.f32 %v718, %v880
      %v939 = vmul.f32 %v724, %v882
      %v940 = vmul.f32 %v728, %v884
      %v941 = vmul.f32 %v734, %v886
      %v942 = vmul.f32 %v738, %v888
      %v943 = vmul.f32 %v744, %v890
      %v944 = vmul.f32 %v748, %v892
      %v945 = vmul.f32 %v754, %v894
      %v946 = vmul.f32 %v758, %v896
      %v947 = vmul.f32 %v764, %v898
      %v948 = vmul.f32 %v768, %v900
      %v949 = vld [vmem:[%s3] sm:$0xff]
      %v950 = vld [vmem:[%s3 + $0x8] sm:$0xff]
      %v951 = vld [vmem:[%s3 + $0x10] sm:$0xff]
      %v952 = vld [vmem:[%s3 + $0x18] sm:$0xff]
      %v953 = vld [vmem:[%s3 + $0x20] sm:$0xff]
      %v954 = vld [vmem:[%s3 + $0x28] sm:$0xff]
      %v955 = vld [vmem:[%s3 + $0x30] sm:$0xff]
      %v956 = vld [vmem:[%s3 + $0x38] sm:$0xff]
      %v957 = vld [vmem:[%s3 + $0x40] sm:$0xff]
      %v958 = vld [vmem:[%s3 + $0x48] sm:$0xff]
      %v959 = vld [vmem:[%s3 + $0x50] sm:$0xff]
      %v960 = vld [vmem:[%s3 + $0x58] sm:$0xff]
      %v961 = vld [vmem:[%s3 + $0x60] sm:$0xff]
      %v962 = vld [vmem:[%s3 + $0x68] sm:$0xff]
      %v963 = vld [vmem:[%s3 + $0x70] sm:$0xff]
      %v964 = vld [vmem:[%s3 + $0x78] sm:$0xff]
      %965 = vmatprep.subr.mxu0 0.0
      %966 = vmatpush1.msra.mxu0 %v949
      %967 = vmatprep.subr.mxu0 0.0
      %968 = vmatpush1.msra.mxu0 %v950
      %969 = vmatprep.subr.mxu0 0.0
      %970 = vmatpush1.msra.mxu0 %v951
      %971 = vmatprep.subr.mxu0 0.0
      %972 = vmatpush1.msra.mxu0 %v952
      %973 = vmatprep.subr.mxu0 0.0
      %974 = vmatpush1.msra.mxu0 %v953
      %975 = vmatprep.subr.mxu0 0.0
      %976 = vmatpush1.msra.mxu0 %v954
      %977 = vmatprep.subr.mxu0 0.0
      %978 = vmatpush1.msra.mxu0 %v955
      %979 = vmatprep.subr.mxu0 0.0
      %980 = vmatpush1.msra.mxu0 %v956
      %981 = vmatprep.subr.mxu0 0.0
      %982 = vmatpush1.msra.mxu0 %v957
      %983 = vmatprep.subr.mxu0 0.0
      %984 = vmatpush1.msra.mxu0 %v958
      %985 = vmatprep.subr.mxu0 0.0
      %986 = vmatpush1.msra.mxu0 %v959
      %987 = vmatprep.subr.mxu0 0.0
      %988 = vmatpush1.msra.mxu0 %v960
      %989 = vmatprep.subr.mxu0 0.0
      %990 = vmatpush1.msra.mxu0 %v961
      %991 = vmatprep.subr.mxu0 0.0
      %992 = vmatpush1.msra.mxu0 %v962
      %993 = vmatprep.subr.mxu0 0.0
      %994 = vmatpush1.msra.mxu0 %v963
      %995 = vmatprep.subr.mxu0 0.0
      %996 = vmatpush1.msra.mxu0 %v964
      %997 = vmatprep.subr.mxu0 0.0
      %998 = vmatpush1.msra.mxu0 0.0
      %999 = vmatprep.subr.mxu0 0.0
      %1000 = vmatpush1.msra.mxu0 0.0
      %1001 = vmatprep.subr.mxu0 0.0
      %1002 = vmatpush1.msra.mxu0 0.0
      %1003 = vmatprep.subr.mxu0 0.0
      %1004 = vmatpush1.msra.mxu0 0.0
      %1005 = vmatprep.subr.mxu0 0.0
      %1006 = vmatpush1.msra.mxu0 0.0
      %1007 = vmatprep.subr.mxu0 0.0
      %1008 = vmatpush1.msra.mxu0 0.0
      %1009 = vmatprep.subr.mxu0 0.0
      %1010 = vmatpush1.msra.mxu0 0.0
      %1011 = vmatprep.subr.mxu0 0.0
      %1012 = vmatpush1.msra.mxu0 0.0
      %1013 = vmatprep.subr.mxu0 0.0
      %1014 = vmatpush1.msra.mxu0 0.0
      %1015 = vmatprep.subr.mxu0 0.0
      %1016 = vmatpush1.msra.mxu0 0.0
      %1017 = vmatprep.subr.mxu0 0.0
      %1018 = vmatpush1.msra.mxu0 0.0
      %1019 = vmatprep.subr.mxu0 0.0
      %1020 = vmatpush1.msra.mxu0 0.0
      %1021 = vmatprep.subr.mxu0 0.0
      %1022 = vmatpush1.msra.mxu0 0.0
      %1023 = vmatprep.subr.mxu0 0.0
      %1024 = vmatpush1.msra.mxu0 0.0
      %1025 = vmatprep.subr.mxu0 0.0
      %1026 = vmatpush1.msra.mxu0 0.0
      %1027 = vmatprep.subr.mxu0 0.0
      %1028 = vmatpush1.msra.mxu0 0.0
      %1029 = vmatprep.mubr.f32.mxu0 0.0
      %1030 = vmatmul.mubr.f32.gmra.mrb[0].mxu0 %v933
      %v1031 = vpop.f32.mrb[0].mxu0
      %v1032 = vadd.f32 0.0, %v1031
      %v1033 = vpop.f32.mrb[0].mxu0
      %1034 = vmatprep.mubr.f32.mxu0 0.0
      %1035 = vmatmul.mubr.f32.gmra.mrb[0].mxu0 %v934
      %v1036 = vpop.f32.mrb[0].mxu0
      %v1037 = vadd.f32 0.0, %v1036
      %v1038 = vpop.f32.mrb[0].mxu0
      %1039 = vmatprep.mubr.f32.mxu0 0.0
      %1040 = vmatmul.mubr.f32.gmra.mrb[0].mxu0 %v935
      %v1041 = vpop.f32.mrb[0].mxu0
      %v1042 = vadd.f32 0.0, %v1041
      %v1043 = vpop.f32.mrb[0].mxu0
      %1044 = vmatprep.mubr.f32.mxu0 0.0
      %1045 = vmatmul.mubr.f32.gmra.mrb[0].mxu0 %v936
      %v1046 = vpop.f32.mrb[0].mxu0
      %v1047 = vadd.f32 0.0, %v1046
      %v1048 = vpop.f32.mrb[0].mxu0
      %1049 = vmatprep.mubr.f32.mxu0 0.0
      %1050 = vmatmul.mubr.f32.gmra.mrb[0].mxu0 %v937
      %v1051 = vpop.f32.mrb[0].mxu0
      %v1052 = vadd.f32 0.0, %v1051
      %v1053 = vpop.f32.mrb[0].mxu0
      %1054 = vmatprep.mubr.f32.mxu0 0.0
      %1055 = vmatmul.mubr.f32.gmra.mrb[0].mxu0 %v938
      %v1056 = vpop.f32.mrb[0].mxu0
      %v1057 = vadd.f32 0.0, %v1056
      %v1058 = vpop.f32.mrb[0].mxu0
      %1059 = vmatprep.mubr.f32.mxu0 0.0
      %1060 = vmatmul.mubr.f32.gmra.mrb[0].mxu0 %v939
      %v1061 = vpop.f32.mrb[0].mxu0
      %v1062 = vadd.f32 0.0, %v1061
      %v1063 = vpop.f32.mrb[0].mxu0
      %1064 = vmatprep.mubr.f32.mxu0 0.0
      %1065 = vmatmul.mubr.f32.gmra.mrb[0].mxu0 %v940
      %v1066 = vpop.f32.mrb[0].mxu0
      %v1067 = vadd.f32 0.0, %v1066
      %v1068 = vpop.f32.mrb[0].mxu0
      %1069 = vmatprep.mubr.f32.mxu0 0.0
      %1070 = vmatmul.mubr.f32.gmra.mrb[0].mxu0 %v941
      %v1071 = vpop.f32.mrb[0].mxu0
      %v1072 = vadd.f32 0.0, %v1071
      %v1073 = vpop.f32.mrb[0].mxu0
      %1074 = vmatprep.mubr.f32.mxu0 0.0
      %1075 = vmatmul.mubr.f32.gmra.mrb[0].mxu0 %v942
      %v1076 = vpop.f32.mrb[0].mxu0
      %v1077 = vadd.f32 0.0, %v1076
      %v1078 = vpop.f32.mrb[0].mxu0
      %1079 = vmatprep.mubr.f32.mxu0 0.0
      %1080 = vmatmul.mubr.f32.gmra.mrb[0].mxu0 %v943
      %v1081 = vpop.f32.mrb[0].mxu0
      %v1082 = vadd.f32 0.0, %v1081
      %v1083 = vpop.f32.mrb[0].mxu0
      %1084 = vmatprep.mubr.f32.mxu0 0.0
      %1085 = vmatmul.mubr.f32.gmra.mrb[0].mxu0 %v944
      %v1086 = vpop.f32.mrb[0].mxu0
      %v1087 = vadd.f32 0.0, %v1086
      %v1088 = vpop.f32.mrb[0].mxu0
      %1089 = vmatprep.mubr.f32.mxu0 0.0
      %1090 = vmatmul.mubr.f32.gmra.mrb[0].mxu0 %v945
      %v1091 = vpop.f32.mrb[0].mxu0
      %v1092 = vadd.f32 0.0, %v1091
      %v1093 = vpop.f32.mrb[0].mxu0
      %1094 = vmatprep.mubr.f32.mxu0 0.0
      %1095 = vmatmul.mubr.f32.gmra.mrb[0].mxu0 %v946
      %v1096 = vpop.f32.mrb[0].mxu0
      %v1097 = vadd.f32 0.0, %v1096
      %v1098 = vpop.f32.mrb[0].mxu0
      %1099 = vmatprep.mubr.f32.mxu0 0.0
      %1100 = vmatmul.mubr.f32.gmra.mrb[0].mxu0 %v947
      %v1101 = vpop.f32.mrb[0].mxu0
      %v1102 = vadd.f32 0.0, %v1101
      %v1103 = vpop.f32.mrb[0].mxu0
      %1104 = vmatprep.mubr.f32.mxu0 0.0
      %1105 = vmatmul.mubr.f32.gmra.mrb[0].mxu0 %v948
      %v1106 = vpop.f32.mrb[0].mxu0
      %v1107 = vadd.f32 0.0, %v1106
      %v1108 = vpop.f32.mrb[0].mxu0
      %1109 = vdwg.mxu0
      %1110 = vrot.lane.b32.xlu0 %v696, 64
      %v1111 = vpop.permute.xlu0 %1110
      %1112 = vrot.lane.b32.xlu0 %v700, 64
      %v1113 = vpop.permute.xlu0 %1112
      %1114 = vrot.lane.b32.xlu0 %v706, 64
      %v1115 = vpop.permute.xlu0 %1114
      %1116 = vrot.lane.b32.xlu0 %v710, 64
      %v1117 = vpop.permute.xlu0 %1116
      %1118 = vrot.lane.b32.xlu0 %v716, 64
      %v1119 = vpop.permute.xlu0 %1118
      %1120 = vrot.lane.b32.xlu0 %v720, 64
      %v1121 = vpop.permute.xlu0 %1120
      %1122 = vrot.lane.b32.xlu0 %v726, 64
      %v1123 = vpop.permute.xlu0 %1122
      %1124 = vrot.lane.b32.xlu0 %v730, 64
      %v1125 = vpop.permute.xlu0 %1124
      %1126 = vrot.lane.b32.xlu0 %v736, 64
      %v1127 = vpop.permute.xlu0 %1126
      %1128 = vrot.lane.b32.xlu0 %v740, 64
      %v1129 = vpop.permute.xlu0 %1128
      %1130 = vrot.lane.b32.xlu0 %v746, 64
      %v1131 = vpop.permute.xlu0 %1130
      %1132 = vrot.lane.b32.xlu0 %v750, 64
      %v1133 = vpop.permute.xlu0 %1132
      %1134 = vrot.lane.b32.xlu0 %v756, 64
      %v1135 = vpop.permute.xlu0 %1134
      %1136 = vrot.lane.b32.xlu0 %v760, 64
      %v1137 = vpop.permute.xlu0 %1136
      %1138 = vrot.lane.b32.xlu0 %v766, 64
      %v1139 = vpop.permute.xlu0 %1138
      %1140 = vrot.lane.b32.xlu0 %v770, 64
      %v1141 = vpop.permute.xlu0 %1140
      %1142 = vrot.lane.b32.xlu0 %v807, 64
      %v1143 = vpop.permute.xlu0 %1142
      %1144 = vrot.lane.b32.xlu0 %v810, 64
      %v1145 = vpop.permute.xlu0 %1144
      %1146 = vrot.lane.b32.xlu0 %v815, 64
      %v1147 = vpop.permute.xlu0 %1146
      %1148 = vrot.lane.b32.xlu0 %v818, 64
      %v1149 = vpop.permute.xlu0 %1148
      %1150 = vrot.lane.b32.xlu0 %v823, 64
      %v1151 = vpop.permute.xlu0 %1150
      %1152 = vrot.lane.b32.xlu0 %v826, 64
      %v1153 = vpop.permute.xlu0 %1152
      %1154 = vrot.lane.b32.xlu0 %v831, 64
      %v1155 = vpop.permute.xlu0 %1154
      %1156 = vrot.lane.b32.xlu0 %v834, 64
      %v1157 = vpop.permute.xlu0 %1156
      %1158 = vrot.lane.b32.xlu0 %v839, 64
      %v1159 = vpop.permute.xlu0 %1158
      %1160 = vrot.lane.b32.xlu0 %v842, 64
      %v1161 = vpop.permute.xlu0 %1160
      %1162 = vrot.lane.b32.xlu0 %v847, 64
      %v1163 = vpop.permute.xlu0 %1162
      %1164 = vrot.lane.b32.xlu0 %v850, 64
      %v1165 = vpop.permute.xlu0 %1164
      %1166 = vrot.lane.b32.xlu0 %v855, 64
      %v1167 = vpop.permute.xlu0 %1166
      %1168 = vrot.lane.b32.xlu0 %v858, 64
      %v1169 = vpop.permute.xlu0 %1168
      %1170 = vrot.lane.b32.xlu0 %v863, 64
      %v1171 = vpop.permute.xlu0 %1170
      %1172 = vrot.lane.b32.xlu0 %v866, 64
      %v1173 = vpop.permute.xlu0 %1172
      %v1174 = vmul.f32 %v694, %v1111
      %v1175 = vmul.f32 %v698, %v1113
      %v1176 = vmul.f32 %v704, %v1115
      %v1177 = vmul.f32 %v708, %v1117
      %v1178 = vmul.f32 %v714, %v1119
      %v1179 = vmul.f32 %v718, %v1121
      %v1180 = vmul.f32 %v724, %v1123
      %v1181 = vmul.f32 %v728, %v1125
      %v1182 = vmul.f32 %v734, %v1127
      %v1183 = vmul.f32 %v738, %v1129
      %v1184 = vmul.f32 %v744, %v1131
      %v1185 = vmul.f32 %v748, %v1133
      %v1186 = vmul.f32 %v754, %v1135
      %v1187 = vmul.f32 %v758, %v1137
      %v1188 = vmul.f32 %v764, %v1139
      %v1189 = vmul.f32 %v768, %v1141
      %1190 = vmatprep.subr.mxu0 0.0
      %1191 = vmatpush1.msra.mxu0 %v949
      %1192 = vmatprep.subr.mxu0 0.0
      %1193 = vmatpush1.msra.mxu0 %v950
      %1194 = vmatprep.subr.mxu0 0.0
      %1195 = vmatpush1.msra.mxu0 %v951
      %1196 = vmatprep.subr.mxu0 0.0
      %1197 = vmatpush1.msra.mxu0 %v952
      %1198 = vmatprep.subr.mxu0 0.0
      %1199 = vmatpush1.msra.mxu0 %v953
      %1200 = vmatprep.subr.mxu0 0.0
      %1201 = vmatpush1.msra.mxu0 %v954
      %1202 = vmatprep.subr.mxu0 0.0
      %1203 = vmatpush1.msra.mxu0 %v955
      %1204 = vmatprep.subr.mxu0 0.0
      %1205 = vmatpush1.msra.mxu0 %v956
      %1206 = vmatprep.subr.mxu0 0.0
      %1207 = vmatpush1.msra.mxu0 %v957
      %1208 = vmatprep.subr.mxu0 0.0
      %1209 = vmatpush1.msra.mxu0 %v958
      %1210 = vmatprep.subr.mxu0 0.0
      %1211 = vmatpush1.msra.mxu0 %v959
      %1212 = vmatprep.subr.mxu0 0.0
      %1213 = vmatpush1.msra.mxu0 %v960
      %1214 = vmatprep.subr.mxu0 0.0
      %1215 = vmatpush1.msra.mxu0 %v961
      %1216 = vmatprep.subr.mxu0 0.0
      %1217 = vmatpush1.msra.mxu0 %v962
      %1218 = vmatprep.subr.mxu0 0.0
      %1219 = vmatpush1.msra.mxu0 %v963
      %1220 = vmatprep.subr.mxu0 0.0
      %1221 = vmatpush1.msra.mxu0 %v964
      %1222 = vmatprep.subr.mxu0 0.0
      %1223 = vmatpush1.msra.mxu0 0.0
      %1224 = vmatprep.subr.mxu0 0.0
      %1225 = vmatpush1.msra.mxu0 0.0
      %1226 = vmatprep.subr.mxu0 0.0
      %1227 = vmatpush1.msra.mxu0 0.0
      %1228 = vmatprep.subr.mxu0 0.0
      %1229 = vmatpush1.msra.mxu0 0.0
      %1230 = vmatprep.subr.mxu0 0.0
      %1231 = vmatpush1.msra.mxu0 0.0
      %1232 = vmatprep.subr.mxu0 0.0
      %1233 = vmatpush1.msra.mxu0 0.0
      %1234 = vmatprep.subr.mxu0 0.0
      %1235 = vmatpush1.msra.mxu0 0.0
      %1236 = vmatprep.subr.mxu0 0.0
      %1237 = vmatpush1.msra.mxu0 0.0
      %1238 = vmatprep.subr.mxu0 0.0
      %1239 = vmatpush1.msra.mxu0 0.0
      %1240 = vmatprep.subr.mxu0 0.0
      %1241 = vmatpush1.msra.mxu0 0.0
      %1242 = vmatprep.subr.mxu0 0.0
      %1243 = vmatpush1.msra.mxu0 0.0
      %1244 = vmatprep.subr.mxu0 0.0
      %1245 = vmatpush1.msra.mxu0 0.0
      %1246 = vmatprep.subr.mxu0 0.0
      %1247 = vmatpush1.msra.mxu0 0.0
      %1248 = vmatprep.subr.mxu0 0.0
      %1249 = vmatpush1.msra.mxu0 0.0
      %1250 = vmatprep.subr.mxu0 0.0
      %1251 = vmatpush1.msra.mxu0 0.0
      %1252 = vmatprep.subr.mxu0 0.0
      %1253 = vmatpush1.msra.mxu0 0.0
      %1254 = vmatprep.mubr.f32.mxu0 0.0
      %1255 = vmatmul.mubr.f32.gmra.mrb[0].mxu0 %v1174
      %v1256 = vpop.f32.mrb[0].mxu0
      %v1257 = vadd.f32 0.0, %v1256
      %v1258 = vpop.f32.mrb[0].mxu0
      %1259 = vmatprep.mubr.f32.mxu0 0.0
      %1260 = vmatmul.mubr.f32.gmra.mrb[0].mxu0 %v1175
      %v1261 = vpop.f32.mrb[0].mxu0
      %v1262 = vadd.f32 0.0, %v1261
      %v1263 = vpop.f32.mrb[0].mxu0
      %1264 = vmatprep.mubr.f32.mxu0 0.0
      %1265 = vmatmul.mubr.f32.gmra.mrb[0].mxu0 %v1176
      %v1266 = vpop.f32.mrb[0].mxu0
      %v1267 = vadd.f32 0.0, %v1266
      %v1268 = vpop.f32.mrb[0].mxu0
      %1269 = vmatprep.mubr.f32.mxu0 0.0
      %1270 = vmatmul.mubr.f32.gmra.mrb[0].mxu0 %v1177
      %v1271 = vpop.f32.mrb[0].mxu0
      %v1272 = vadd.f32 0.0, %v1271
      %v1273 = vpop.f32.mrb[0].mxu0
      %1274 = vmatprep.mubr.f32.mxu0 0.0
      %1275 = vmatmul.mubr.f32.gmra.mrb[0].mxu0 %v1178
      %v1276 = vpop.f32.mrb[0].mxu0
      %v1277 = vadd.f32 0.0, %v1276
      %v1278 = vpop.f32.mrb[0].mxu0
      %1279 = vmatprep.mubr.f32.mxu0 0.0
      %1280 = vmatmul.mubr.f32.gmra.mrb[0].mxu0 %v1179
      %v1281 = vpop.f32.mrb[0].mxu0
      %v1282 = vadd.f32 0.0, %v1281
      %v1283 = vpop.f32.mrb[0].mxu0
      %1284 = vmatprep.mubr.f32.mxu0 0.0
      %1285 = vmatmul.mubr.f32.gmra.mrb[0].mxu0 %v1180
      %v1286 = vpop.f32.mrb[0].mxu0
      %v1287 = vadd.f32 0.0, %v1286
      %v1288 = vpop.f32.mrb[0].mxu0
      %1289 = vmatprep.mubr.f32.mxu0 0.0
      %1290 = vmatmul.mubr.f32.gmra.mrb[0].mxu0 %v1181
      %v1291 = vpop.f32.mrb[0].mxu0
      %v1292 = vadd.f32 0.0, %v1291
      %v1293 = vpop.f32.mrb[0].mxu0
      %1294 = vmatprep.mubr.f32.mxu0 0.0
      %1295 = vmatmul.mubr.f32.gmra.mrb[0].mxu0 %v1182
      %v1296 = vpop.f32.mrb[0].mxu0
      %v1297 = vadd.f32 0.0, %v1296
      %v1298 = vpop.f32.mrb[0].mxu0
      %1299 = vmatprep.mubr.f32.mxu0 0.0
      %1300 = vmatmul.mubr.f32.gmra.mrb[0].mxu0 %v1183
      %v1301 = vpop.f32.mrb[0].mxu0
      %v1302 = vadd.f32 0.0, %v1301
      %v1303 = vpop.f32.mrb[0].mxu0
      %1304 = vmatprep.mubr.f32.mxu0 0.0
      %1305 = vmatmul.mubr.f32.gmra.mrb[0].mxu0 %v1184
      %v1306 = vpop.f32.mrb[0].mxu0
      %v1307 = vadd.f32 0.0, %v1306
      %v1308 = vpop.f32.mrb[0].mxu0
      %1309 = vmatprep.mubr.f32.mxu0 0.0
      %1310 = vmatmul.mubr.f32.gmra.mrb[0].mxu0 %v1185
      %v1311 = vpop.f32.mrb[0].mxu0
      %v1312 = vadd.f32 0.0, %v1311
      %v1313 = vpop.f32.mrb[0].mxu0
      %1314 = vmatprep.mubr.f32.mxu0 0.0
      %1315 = vmatmul.mubr.f32.gmra.mrb[0].mxu0 %v1186
      %v1316 = vpop.f32.mrb[0].mxu0
      %v1317 = vadd.f32 0.0, %v1316
      %v1318 = vpop.f32.mrb[0].mxu0
      %1319 = vmatprep.mubr.f32.mxu0 0.0
      %1320 = vmatmul.mubr.f32.gmra.mrb[0].mxu0 %v1187
      %v1321 = vpop.f32.mrb[0].mxu0
      %v1322 = vadd.f32 0.0, %v1321
      %v1323 = vpop.f32.mrb[0].mxu0
      %1324 = vmatprep.mubr.f32.mxu0 0.0
      %1325 = vmatmul.mubr.f32.gmra.mrb[0].mxu0 %v1188
      %v1326 = vpop.f32.mrb[0].mxu0
      %v1327 = vadd.f32 0.0, %v1326
      %v1328 = vpop.f32.mrb[0].mxu0
      %1329 = vmatprep.mubr.f32.mxu0 0.0
      %1330 = vmatmul.mubr.f32.gmra.mrb[0].mxu0 %v1189
      %v1331 = vpop.f32.mrb[0].mxu0
      %v1332 = vadd.f32 0.0, %v1331
      %v1333 = vpop.f32.mrb[0].mxu0
      %1334 = vdwg.mxu0
      %1335 = vrot.lane.b32.xlu0 %v696, 96
      %v1336 = vpop.permute.xlu0 %1335
      %1337 = vrot.lane.b32.xlu0 %v700, 96
      %v1338 = vpop.permute.xlu0 %1337
      %1339 = vrot.lane.b32.xlu0 %v706, 96
      %v1340 = vpop.permute.xlu0 %1339
      %1341 = vrot.lane.b32.xlu0 %v710, 96
      %v1342 = vpop.permute.xlu0 %1341
      %1343 = vrot.lane.b32.xlu0 %v716, 96
      %v1344 = vpop.permute.xlu0 %1343
      %1345 = vrot.lane.b32.xlu0 %v720, 96
      %v1346 = vpop.permute.xlu0 %1345
      %1347 = vrot.lane.b32.xlu0 %v726, 96
      %v1348 = vpop.permute.xlu0 %1347
      %1349 = vrot.lane.b32.xlu0 %v730, 96
      %v1350 = vpop.permute.xlu0 %1349
      %1351 = vrot.lane.b32.xlu0 %v736, 96
      %v1352 = vpop.permute.xlu0 %1351
      %1353 = vrot.lane.b32.xlu0 %v740, 96
      %v1354 = vpop.permute.xlu0 %1353
      %1355 = vrot.lane.b32.xlu0 %v746, 96
      %v1356 = vpop.permute.xlu0 %1355
      %1357 = vrot.lane.b32.xlu0 %v750, 96
      %v1358 = vpop.permute.xlu0 %1357
      %1359 = vrot.lane.b32.xlu0 %v756, 96
      %v1360 = vpop.permute.xlu0 %1359
      %1361 = vrot.lane.b32.xlu0 %v760, 96
      %v1362 = vpop.permute.xlu0 %1361
      %1363 = vrot.lane.b32.xlu0 %v766, 96
      %v1364 = vpop.permute.xlu0 %1363
      %1365 = vrot.lane.b32.xlu0 %v770, 96
      %v1366 = vpop.permute.xlu0 %1365
      %1367 = vrot.lane.b32.xlu0 %v807, 96
      %v1368 = vpop.permute.xlu0 %1367
      %1369 = vrot.lane.b32.xlu0 %v810, 96
      %v1370 = vpop.permute.xlu0 %1369
      %1371 = vrot.lane.b32.xlu0 %v815, 96
      %v1372 = vpop.permute.xlu0 %1371
      %1373 = vrot.lane.b32.xlu0 %v818, 96
      %v1374 = vpop.permute.xlu0 %1373
      %1375 = vrot.lane.b32.xlu0 %v823, 96
      %v1376 = vpop.permute.xlu0 %1375
      %1377 = vrot.lane.b32.xlu0 %v826, 96
      %v1378 = vpop.permute.xlu0 %1377
      %1379 = vrot.lane.b32.xlu0 %v831, 96
      %v1380 = vpop.permute.xlu0 %1379
      %1381 = vrot.lane.b32.xlu0 %v834, 96
      %v1382 = vpop.permute.xlu0 %1381
      %1383 = vrot.lane.b32.xlu0 %v839, 96
      %v1384 = vpop.permute.xlu0 %1383
      %1385 = vrot.lane.b32.xlu0 %v842, 96
      %v1386 = vpop.permute.xlu0 %1385
      %1387 = vrot.lane.b32.xlu0 %v847, 96
      %v1388 = vpop.permute.xlu0 %1387
      %1389 = vrot.lane.b32.xlu0 %v850, 96
      %v1390 = vpop.permute.xlu0 %1389
      %1391 = vrot.lane.b32.xlu0 %v855, 96
      %v1392 = vpop.permute.xlu0 %1391
      %1393 = vrot.lane.b32.xlu0 %v858, 96
      %v1394 = vpop.permute.xlu0 %1393
      %1395 = vrot.lane.b32.xlu0 %v863, 96
      %v1396 = vpop.permute.xlu0 %1395
      %1397 = vrot.lane.b32.xlu0 %v866, 96
      %v1398 = vpop.permute.xlu0 %1397
      %v1399 = vmul.f32 %v694, %v1336
      %v1400 = vmul.f32 %v698, %v1338
      %v1401 = vmul.f32 %v704, %v1340
      %v1402 = vmul.f32 %v708, %v1342
      %v1403 = vmul.f32 %v714, %v1344
      %v1404 = vmul.f32 %v718, %v1346
      %v1405 = vmul.f32 %v724, %v1348
      %v1406 = vmul.f32 %v728, %v1350
      %v1407 = vmul.f32 %v734, %v1352
      %v1408 = vmul.f32 %v738, %v1354
      %v1409 = vmul.f32 %v744, %v1356
      %v1410 = vmul.f32 %v748, %v1358
      %v1411 = vmul.f32 %v754, %v1360
      %v1412 = vmul.f32 %v758, %v1362
      %v1413 = vmul.f32 %v764, %v1364
      %v1414 = vmul.f32 %v768, %v1366
      %1415 = vmatprep.subr.mxu0 0.0
      %1416 = vmatpush1.msra.mxu0 %v949
      %1417 = vmatprep.subr.mxu0 0.0
      %1418 = vmatpush1.msra.mxu0 %v950
      %1419 = vmatprep.subr.mxu0 0.0
      %1420 = vmatpush1.msra.mxu0 %v951
      %1421 = vmatprep.subr.mxu0 0.0
      %1422 = vmatpush1.msra.mxu0 %v952
      %1423 = vmatprep.subr.mxu0 0.0
      %1424 = vmatpush1.msra.mxu0 %v953
      %1425 = vmatprep.subr.mxu0 0.0
      %1426 = vmatpush1.msra.mxu0 %v954
      %1427 = vmatprep.subr.mxu0 0.0
      %1428 = vmatpush1.msra.mxu0 %v955
      %1429 = vmatprep.subr.mxu0 0.0
      %1430 = vmatpush1.msra.mxu0 %v956
      %1431 = vmatprep.subr.mxu0 0.0
      %1432 = vmatpush1.msra.mxu0 %v957
      %1433 = vmatprep.subr.mxu0 0.0
      %1434 = vmatpush1.msra.mxu0 %v958
      %1435 = vmatprep.subr.mxu0 0.0
      %1436 = vmatpush1.msra.mxu0 %v959
      %1437 = vmatprep.subr.mxu0 0.0
      %1438 = vmatpush1.msra.mxu0 %v960
      %1439 = vmatprep.subr.mxu0 0.0
      %1440 = vmatpush1.msra.mxu0 %v961
      %1441 = vmatprep.subr.mxu0 0.0
      %1442 = vmatpush1.msra.mxu0 %v962
      %1443 = vmatprep.subr.mxu0 0.0
      %1444 = vmatpush1.msra.mxu0 %v963
      %1445 = vmatprep.subr.mxu0 0.0
      %1446 = vmatpush1.msra.mxu0 %v964
      %1447 = vmatprep.subr.mxu0 0.0
      %1448 = vmatpush1.msra.mxu0 0.0
      %1449 = vmatprep.subr.mxu0 0.0
      %1450 = vmatpush1.msra.mxu0 0.0
      %1451 = vmatprep.subr.mxu0 0.0
      %1452 = vmatpush1.msra.mxu0 0.0
      %1453 = vmatprep.subr.mxu0 0.0
      %1454 = vmatpush1.msra.mxu0 0.0
      %1455 = vmatprep.subr.mxu0 0.0
      %1456 = vmatpush1.msra.mxu0 0.0
      %1457 = vmatprep.subr.mxu0 0.0
      %1458 = vmatpush1.msra.mxu0 0.0
      %1459 = vmatprep.subr.mxu0 0.0
      %1460 = vmatpush1.msra.mxu0 0.0
      %1461 = vmatprep.subr.mxu0 0.0
      %1462 = vmatpush1.msra.mxu0 0.0
      %1463 = vmatprep.subr.mxu0 0.0
      %1464 = vmatpush1.msra.mxu0 0.0
      %1465 = vmatprep.subr.mxu0 0.0
      %1466 = vmatpush1.msra.mxu0 0.0
      %1467 = vmatprep.subr.mxu0 0.0
      %1468 = vmatpush1.msra.mxu0 0.0
      %1469 = vmatprep.subr.mxu0 0.0
      %1470 = vmatpush1.msra.mxu0 0.0
      %1471 = vmatprep.subr.mxu0 0.0
      %1472 = vmatpush1.msra.mxu0 0.0
      %1473 = vmatprep.subr.mxu0 0.0
      %1474 = vmatpush1.msra.mxu0 0.0
      %1475 = vmatprep.subr.mxu0 0.0
      %1476 = vmatpush1.msra.mxu0 0.0
      %1477 = vmatprep.subr.mxu0 0.0
      %1478 = vmatpush1.msra.mxu0 0.0
      %1479 = vmatprep.mubr.f32.mxu0 0.0
      %1480 = vmatmul.mubr.f32.gmra.mrb[0].mxu0 %v1399
      %v1481 = vpop.f32.mrb[0].mxu0
      %v1482 = vadd.f32 0.0, %v1481
      %v1483 = vpop.f32.mrb[0].mxu0
      %1484 = vmatprep.mubr.f32.mxu0 0.0
      %1485 = vmatmul.mubr.f32.gmra.mrb[0].mxu0 %v1400
      %v1486 = vpop.f32.mrb[0].mxu0
      %v1487 = vadd.f32 0.0, %v1486
      %v1488 = vpop.f32.mrb[0].mxu0
      %1489 = vmatprep.mubr.f32.mxu0 0.0
      %1490 = vmatmul.mubr.f32.gmra.mrb[0].mxu0 %v1401
      %v1491 = vpop.f32.mrb[0].mxu0
      %v1492 = vadd.f32 0.0, %v1491
      %v1493 = vpop.f32.mrb[0].mxu0
      %1494 = vmatprep.mubr.f32.mxu0 0.0
      %1495 = vmatmul.mubr.f32.gmra.mrb[0].mxu0 %v1402
      %v1496 = vpop.f32.mrb[0].mxu0
      %v1497 = vadd.f32 0.0, %v1496
      %v1498 = vpop.f32.mrb[0].mxu0
      %1499 = vmatprep.mubr.f32.mxu0 0.0
      %1500 = vmatmul.mubr.f32.gmra.mrb[0].mxu0 %v1403
      %v1501 = vpop.f32.mrb[0].mxu0
      %v1502 = vadd.f32 0.0, %v1501
      %v1503 = vpop.f32.mrb[0].mxu0
      %1504 = vmatprep.mubr.f32.mxu0 0.0
      %1505 = vmatmul.mubr.f32.gmra.mrb[0].mxu0 %v1404
      %v1506 = vpop.f32.mrb[0].mxu0
      %v1507 = vadd.f32 0.0, %v1506
      %v1508 = vpop.f32.mrb[0].mxu0
      %1509 = vmatprep.mubr.f32.mxu0 0.0
      %1510 = vmatmul.mubr.f32.gmra.mrb[0].mxu0 %v1405
      %v1511 = vpop.f32.mrb[0].mxu0
      %v1512 = vadd.f32 0.0, %v1511
      %v1513 = vpop.f32.mrb[0].mxu0
      %1514 = vmatprep.mubr.f32.mxu0 0.0
      %1515 = vmatmul.mubr.f32.gmra.mrb[0].mxu0 %v1406
      %v1516 = vpop.f32.mrb[0].mxu0
      %v1517 = vadd.f32 0.0, %v1516
      %v1518 = vpop.f32.mrb[0].mxu0
      %1519 = vmatprep.mubr.f32.mxu0 0.0
      %1520 = vmatmul.mubr.f32.gmra.mrb[0].mxu0 %v1407
      %v1521 = vpop.f32.mrb[0].mxu0
      %v1522 = vadd.f32 0.0, %v1521
      %v1523 = vpop.f32.mrb[0].mxu0
      %1524 = vmatprep.mubr.f32.mxu0 0.0
      %1525 = vmatmul.mubr.f32.gmra.mrb[0].mxu0 %v1408
      %v1526 = vpop.f32.mrb[0].mxu0
      %v1527 = vadd.f32 0.0, %v1526
      %v1528 = vpop.f32.mrb[0].mxu0
      %1529 = vmatprep.mubr.f32.mxu0 0.0
      %1530 = vmatmul.mubr.f32.gmra.mrb[0].mxu0 %v1409
      %v1531 = vpop.f32.mrb[0].mxu0
      %v1532 = vadd.f32 0.0, %v1531
      %v1533 = vpop.f32.mrb[0].mxu0
      %1534 = vmatprep.mubr.f32.mxu0 0.0
      %1535 = vmatmul.mubr.f32.gmra.mrb[0].mxu0 %v1410
      %v1536 = vpop.f32.mrb[0].mxu0
      %v1537 = vadd.f32 0.0, %v1536
      %v1538 = vpop.f32.mrb[0].mxu0
      %1539 = vmatprep.mubr.f32.mxu0 0.0
      %1540 = vmatmul.mubr.f32.gmra.mrb[0].mxu0 %v1411
      %v1541 = vpop.f32.mrb[0].mxu0
      %v1542 = vadd.f32 0.0, %v1541
      %v1543 = vpop.f32.mrb[0].mxu0
      %1544 = vmatprep.mubr.f32.mxu0 0.0
      %1545 = vmatmul.mubr.f32.gmra.mrb[0].mxu0 %v1412
      %v1546 = vpop.f32.mrb[0].mxu0
      %v1547 = vadd.f32 0.0, %v1546
      %v1548 = vpop.f32.mrb[0].mxu0
      %1549 = vmatprep.mubr.f32.mxu0 0.0
      %1550 = vmatmul.mubr.f32.gmra.mrb[0].mxu0 %v1413
      %v1551 = vpop.f32.mrb[0].mxu0
      %v1552 = vadd.f32 0.0, %v1551
      %v1553 = vpop.f32.mrb[0].mxu0
      %1554 = vmatprep.mubr.f32.mxu0 0.0
      %1555 = vmatmul.mubr.f32.gmra.mrb[0].mxu0 %v1414
      %v1556 = vpop.f32.mrb[0].mxu0
      %v1557 = vadd.f32 0.0, %v1556
      %v1558 = vpop.f32.mrb[0].mxu0
      %1559 = vdwg.mxu0
      %v1560 = vmax.f32 %v1032, %v1257
      %v1561 = vmax.f32 %v1037, %v1262
      %v1562 = vmax.f32 %v1042, %v1267
      %v1563 = vmax.f32 %v1047, %v1272
      %v1564 = vmax.f32 %v1052, %v1277
      %v1565 = vmax.f32 %v1057, %v1282
      %v1566 = vmax.f32 %v1062, %v1287
      %v1567 = vmax.f32 %v1067, %v1292
      %v1568 = vmax.f32 %v1072, %v1297
      %v1569 = vmax.f32 %v1077, %v1302
      %v1570 = vmax.f32 %v1082, %v1307
      %v1571 = vmax.f32 %v1087, %v1312
      %v1572 = vmax.f32 %v1092, %v1317
      %v1573 = vmax.f32 %v1097, %v1322
      %v1574 = vmax.f32 %v1102, %v1327
      %v1575 = vmax.f32 %v1107, %v1332
      %v1576 = vmax.f32 %v1560, %v1482
      %v1577 = vmax.f32 %v1561, %v1487
      %v1578 = vmax.f32 %v1562, %v1492
      %v1579 = vmax.f32 %v1563, %v1497
      %v1580 = vmax.f32 %v1564, %v1502
      %v1581 = vmax.f32 %v1565, %v1507
      %v1582 = vmax.f32 %v1566, %v1512
      %v1583 = vmax.f32 %v1567, %v1517
      %v1584 = vmax.f32 %v1568, %v1522
      %v1585 = vmax.f32 %v1569, %v1527
      %v1586 = vmax.f32 %v1570, %v1532
      %v1587 = vmax.f32 %v1571, %v1537
      %v1588 = vmax.f32 %v1572, %v1542
      %v1589 = vmax.f32 %v1573, %v1547
      %v1590 = vmax.f32 %v1574, %v1552
      %v1591 = vmax.f32 %v1575, %v1557
      %v1592 = vsub.f32 %v1032, %v1576
      %v1593 = vsub.f32 %v1037, %v1577
      %v1594 = vsub.f32 %v1042, %v1578
      %v1595 = vsub.f32 %v1047, %v1579
      %v1596 = vsub.f32 %v1052, %v1580
      %v1597 = vsub.f32 %v1057, %v1581
      %v1598 = vsub.f32 %v1062, %v1582
      %v1599 = vsub.f32 %v1067, %v1583
      %v1600 = vsub.f32 %v1072, %v1584
      %v1601 = vsub.f32 %v1077, %v1585
      %v1602 = vsub.f32 %v1082, %v1586
      %v1603 = vsub.f32 %v1087, %v1587
      %v1604 = vsub.f32 %v1092, %v1588
      %v1605 = vsub.f32 %v1097, %v1589
      %v1606 = vsub.f32 %v1102, %v1590
      %v1607 = vsub.f32 %v1107, %v1591
      %v1608 = vmul.f32 %v1592, 1.442695
      %v1609 = vpow.pop %v1608
      %v1610 = vmul.f32 %v1593, 1.442695
      %v1611 = vpow.pop %v1610
      %v1612 = vmul.f32 %v1594, 1.442695
      %v1613 = vpow.pop %v1612
      %v1614 = vmul.f32 %v1595, 1.442695
      %v1615 = vpow.pop %v1614
      %v1616 = vmul.f32 %v1596, 1.442695
      %v1617 = vpow.pop %v1616
      %v1618 = vmul.f32 %v1597, 1.442695
      %v1619 = vpow.pop %v1618
      %v1620 = vmul.f32 %v1598, 1.442695
      %v1621 = vpow.pop %v1620
      %v1622 = vmul.f32 %v1599, 1.442695
      %v1623 = vpow.pop %v1622
      %v1624 = vmul.f32 %v1600, 1.442695
      %v1625 = vpow.pop %v1624
      %v1626 = vmul.f32 %v1601, 1.442695
      %v1627 = vpow.pop %v1626
      %v1628 = vmul.f32 %v1602, 1.442695
      %v1629 = vpow.pop %v1628
      %v1630 = vmul.f32 %v1603, 1.442695
      %v1631 = vpow.pop %v1630
      %v1632 = vmul.f32 %v1604, 1.442695
      %v1633 = vpow.pop %v1632
      %v1634 = vmul.f32 %v1605, 1.442695
      %v1635 = vpow.pop %v1634
      %v1636 = vmul.f32 %v1606, 1.442695
      %v1637 = vpow.pop %v1636
      %v1638 = vmul.f32 %v1607, 1.442695
      %v1639 = vpow.pop %v1638
      %v1640 = vsub.f32 %v1257, %v1576
      %v1641 = vsub.f32 %v1262, %v1577
      %v1642 = vsub.f32 %v1267, %v1578
      %v1643 = vsub.f32 %v1272, %v1579
      %v1644 = vsub.f32 %v1277, %v1580
      %v1645 = vsub.f32 %v1282, %v1581
      %v1646 = vsub.f32 %v1287, %v1582
      %v1647 = vsub.f32 %v1292, %v1583
      %v1648 = vsub.f32 %v1297, %v1584
      %v1649 = vsub.f32 %v1302, %v1585
      %v1650 = vsub.f32 %v1307, %v1586
      %v1651 = vsub.f32 %v1312, %v1587
      %v1652 = vsub.f32 %v1317, %v1588
      %v1653 = vsub.f32 %v1322, %v1589
      %v1654 = vsub.f32 %v1327, %v1590
      %v1655 = vsub.f32 %v1332, %v1591
      %v1656 = vmul.f32 %v1640, 1.442695
      %v1657 = vpow.pop %v1656
      %v1658 = vmul.f32 %v1641, 1.442695
      %v1659 = vpow.pop %v1658
      %v1660 = vmul.f32 %v1642, 1.442695
      %v1661 = vpow.pop %v1660
      %v1662 = vmul.f32 %v1643, 1.442695
      %v1663 = vpow.pop %v1662
      %v1664 = vmul.f32 %v1644, 1.442695
      %v1665 = vpow.pop %v1664
      %v1666 = vmul.f32 %v1645, 1.442695
      %v1667 = vpow.pop %v1666
      %v1668 = vmul.f32 %v1646, 1.442695
      %v1669 = vpow.pop %v1668
      %v1670 = vmul.f32 %v1647, 1.442695
      %v1671 = vpow.pop %v1670
      %v1672 = vmul.f32 %v1648, 1.442695
      %v1673 = vpow.pop %v1672
      %v1674 = vmul.f32 %v1649, 1.442695
      %v1675 = vpow.pop %v1674
      %v1676 = vmul.f32 %v1650, 1.442695
      %v1677 = vpow.pop %v1676
      %v1678 = vmul.f32 %v1651, 1.442695
      %v1679 = vpow.pop %v1678
      %v1680 = vmul.f32 %v1652, 1.442695
      %v1681 = vpow.pop %v1680
      %v1682 = vmul.f32 %v1653, 1.442695
      %v1683 = vpow.pop %v1682
      %v1684 = vmul.f32 %v1654, 1.442695
      %v1685 = vpow.pop %v1684
      %v1686 = vmul.f32 %v1655, 1.442695
      %v1687 = vpow.pop %v1686
      %v1688 = vsub.f32 %v1482, %v1576
      %v1689 = vsub.f32 %v1487, %v1577
      %v1690 = vsub.f32 %v1492, %v1578
      %v1691 = vsub.f32 %v1497, %v1579
      %v1692 = vsub.f32 %v1502, %v1580
      %v1693 = vsub.f32 %v1507, %v1581
      %v1694 = vsub.f32 %v1512, %v1582
      %v1695 = vsub.f32 %v1517, %v1583
      %v1696 = vsub.f32 %v1522, %v1584
      %v1697 = vsub.f32 %v1527, %v1585
      %v1698 = vsub.f32 %v1532, %v1586
      %v1699 = vsub.f32 %v1537, %v1587
      %v1700 = vsub.f32 %v1542, %v1588
      %v1701 = vsub.f32 %v1547, %v1589
      %v1702 = vsub.f32 %v1552, %v1590
      %v1703 = vsub.f32 %v1557, %v1591
      %v1704 = vmul.f32 %v1688, 1.442695
      %v1705 = vpow.pop %v1704
      %v1706 = vmul.f32 %v1689, 1.442695
      %v1707 = vpow.pop %v1706
      %v1708 = vmul.f32 %v1690, 1.442695
      %v1709 = vpow.pop %v1708
      %v1710 = vmul.f32 %v1691, 1.442695
      %v1711 = vpow.pop %v1710
      %v1712 = vmul.f32 %v1692, 1.442695
      %v1713 = vpow.pop %v1712
      %v1714 = vmul.f32 %v1693, 1.442695
      %v1715 = vpow.pop %v1714
      %v1716 = vmul.f32 %v1694, 1.442695
      %v1717 = vpow.pop %v1716
      %v1718 = vmul.f32 %v1695, 1.442695
      %v1719 = vpow.pop %v1718
      %v1720 = vmul.f32 %v1696, 1.442695
      %v1721 = vpow.pop %v1720
      %v1722 = vmul.f32 %v1697, 1.442695
      %v1723 = vpow.pop %v1722
      %v1724 = vmul.f32 %v1698, 1.442695
      %v1725 = vpow.pop %v1724
      %v1726 = vmul.f32 %v1699, 1.442695
      %v1727 = vpow.pop %v1726
      %v1728 = vmul.f32 %v1700, 1.442695
      %v1729 = vpow.pop %v1728
      %v1730 = vmul.f32 %v1701, 1.442695
      %v1731 = vpow.pop %v1730
      %v1732 = vmul.f32 %v1702, 1.442695
      %v1733 = vpow.pop %v1732
      %v1734 = vmul.f32 %v1703, 1.442695
      %v1735 = vpow.pop %v1734
      %v1736 = vadd.f32 %v1609, %v1657
      %v1737 = vadd.f32 %v1611, %v1659
      %v1738 = vadd.f32 %v1613, %v1661
      %v1739 = vadd.f32 %v1615, %v1663
      %v1740 = vadd.f32 %v1617, %v1665
      %v1741 = vadd.f32 %v1619, %v1667
      %v1742 = vadd.f32 %v1621, %v1669
      %v1743 = vadd.f32 %v1623, %v1671
      %v1744 = vadd.f32 %v1625, %v1673
      %v1745 = vadd.f32 %v1627, %v1675
      %v1746 = vadd.f32 %v1629, %v1677
      %v1747 = vadd.f32 %v1631, %v1679
      %v1748 = vadd.f32 %v1633, %v1681
      %v1749 = vadd.f32 %v1635, %v1683
      %v1750 = vadd.f32 %v1637, %v1685
      %v1751 = vadd.f32 %v1639, %v1687
      %v1752 = vadd.f32 %v1736, %v1705
      %v1753 = vadd.f32 %v1737, %v1707
      %v1754 = vadd.f32 %v1738, %v1709
      %v1755 = vadd.f32 %v1739, %v1711
      %v1756 = vadd.f32 %v1740, %v1713
      %v1757 = vadd.f32 %v1741, %v1715
      %v1758 = vadd.f32 %v1742, %v1717
      %v1759 = vadd.f32 %v1743, %v1719
      %v1760 = vadd.f32 %v1744, %v1721
      %v1761 = vadd.f32 %v1745, %v1723
      %v1762 = vadd.f32 %v1746, %v1725
      %v1763 = vadd.f32 %v1747, %v1727
      %v1764 = vadd.f32 %v1748, %v1729
      %v1765 = vadd.f32 %v1749, %v1731
      %v1766 = vadd.f32 %v1750, %v1733
      %v1767 = vadd.f32 %v1751, %v1735
      %v1768 = vrcp.pop %v1752
      %v1769 = vrcp.pop %v1753
      %v1770 = vrcp.pop %v1754
      %v1771 = vrcp.pop %v1755
      %v1772 = vrcp.pop %v1756
      %v1773 = vrcp.pop %v1757
      %v1774 = vrcp.pop %v1758
      %v1775 = vrcp.pop %v1759
      %v1776 = vrcp.pop %v1760
      %v1777 = vrcp.pop %v1761
      %v1778 = vrcp.pop %v1762
      %v1779 = vrcp.pop %v1763
      %v1780 = vrcp.pop %v1764
      %v1781 = vrcp.pop %v1765
      %v1782 = vrcp.pop %v1766
      %v1783 = vrcp.pop %v1767
      %v1784 = vmul.f32 %v1609, %v1768
      %v1785 = vmul.f32 %v1611, %v1769
      %v1786 = vmul.f32 %v1613, %v1770
      %v1787 = vmul.f32 %v1615, %v1771
      %v1788 = vmul.f32 %v1617, %v1772
      %v1789 = vmul.f32 %v1619, %v1773
      %v1790 = vmul.f32 %v1621, %v1774
      %v1791 = vmul.f32 %v1623, %v1775
      %v1792 = vmul.f32 %v1625, %v1776
      %v1793 = vmul.f32 %v1627, %v1777
      %v1794 = vmul.f32 %v1629, %v1778
      %v1795 = vmul.f32 %v1631, %v1779
      %v1796 = vmul.f32 %v1633, %v1780
      %v1797 = vmul.f32 %v1635, %v1781
      %v1798 = vmul.f32 %v1637, %v1782
      %v1799 = vmul.f32 %v1639, %v1783
      %v1800 = vmul.f32 %v1784, %v902
      %v1801 = vmul.f32 %v1785, %v904
      %v1802 = vmul.f32 %v1786, %v906
      %v1803 = vmul.f32 %v1787, %v908
      %v1804 = vmul.f32 %v1788, %v910
      %v1805 = vmul.f32 %v1789, %v912
      %v1806 = vmul.f32 %v1790, %v914
      %v1807 = vmul.f32 %v1791, %v916
      %v1808 = vmul.f32 %v1792, %v918
      %v1809 = vmul.f32 %v1793, %v920
      %v1810 = vmul.f32 %v1794, %v922
      %v1811 = vmul.f32 %v1795, %v924
      %v1812 = vmul.f32 %v1796, %v926
      %v1813 = vmul.f32 %v1797, %v928
      %v1814 = vmul.f32 %v1798, %v930
      %v1815 = vmul.f32 %v1799, %v932
      %v1816 = vmul.f32 %v1657, %v1768
      %v1817 = vmul.f32 %v1659, %v1769
      %v1818 = vmul.f32 %v1661, %v1770
      %v1819 = vmul.f32 %v1663, %v1771
      %v1820 = vmul.f32 %v1665, %v1772
      %v1821 = vmul.f32 %v1667, %v1773
      %v1822 = vmul.f32 %v1669, %v1774
      %v1823 = vmul.f32 %v1671, %v1775
      %v1824 = vmul.f32 %v1673, %v1776
      %v1825 = vmul.f32 %v1675, %v1777
      %v1826 = vmul.f32 %v1677, %v1778
      %v1827 = vmul.f32 %v1679, %v1779
      %v1828 = vmul.f32 %v1681, %v1780
      %v1829 = vmul.f32 %v1683, %v1781
      %v1830 = vmul.f32 %v1685, %v1782
      %v1831 = vmul.f32 %v1687, %v1783
      %v1832 = vmul.f32 %v1816, %v1143
      %v1833 = vmul.f32 %v1817, %v1145
      %v1834 = vmul.f32 %v1818, %v1147
      %v1835 = vmul.f32 %v1819, %v1149
      %v1836 = vmul.f32 %v1820, %v1151
      %v1837 = vmul.f32 %v1821, %v1153
      %v1838 = vmul.f32 %v1822, %v1155
      %v1839 = vmul.f32 %v1823, %v1157
      %v1840 = vmul.f32 %v1824, %v1159
      %v1841 = vmul.f32 %v1825, %v1161
      %v1842 = vmul.f32 %v1826, %v1163
      %v1843 = vmul.f32 %v1827, %v1165
      %v1844 = vmul.f32 %v1828, %v1167
      %v1845 = vmul.f32 %v1829, %v1169
      %v1846 = vmul.f32 %v1830, %v1171
      %v1847 = vmul.f32 %v1831, %v1173
      %v1848 = vadd.f32 %v1800, %v1832
      %v1849 = vadd.f32 %v1801, %v1833
      %v1850 = vadd.f32 %v1802, %v1834
      %v1851 = vadd.f32 %v1803, %v1835
      %v1852 = vadd.f32 %v1804, %v1836
      %v1853 = vadd.f32 %v1805, %v1837
      %v1854 = vadd.f32 %v1806, %v1838
      %v1855 = vadd.f32 %v1807, %v1839
      %v1856 = vadd.f32 %v1808, %v1840
      %v1857 = vadd.f32 %v1809, %v1841
      %v1858 = vadd.f32 %v1810, %v1842
      %v1859 = vadd.f32 %v1811, %v1843
      %v1860 = vadd.f32 %v1812, %v1844
      %v1861 = vadd.f32 %v1813, %v1845
      %v1862 = vadd.f32 %v1814, %v1846
      %v1863 = vadd.f32 %v1815, %v1847
      %v1864 = vmul.f32 %v1705, %v1768
      %v1865 = vmul.f32 %v1707, %v1769
      %v1866 = vmul.f32 %v1709, %v1770
      %v1867 = vmul.f32 %v1711, %v1771
      %v1868 = vmul.f32 %v1713, %v1772
      %v1869 = vmul.f32 %v1715, %v1773
      %v1870 = vmul.f32 %v1717, %v1774
      %v1871 = vmul.f32 %v1719, %v1775
      %v1872 = vmul.f32 %v1721, %v1776
      %v1873 = vmul.f32 %v1723, %v1777
      %v1874 = vmul.f32 %v1725, %v1778
      %v1875 = vmul.f32 %v1727, %v1779
      %v1876 = vmul.f32 %v1729, %v1780
      %v1877 = vmul.f32 %v1731, %v1781
      %v1878 = vmul.f32 %v1733, %v1782
      %v1879 = vmul.f32 %v1735, %v1783
      %v1880 = vmul.f32 %v1864, %v1368
      %v1881 = vmul.f32 %v1865, %v1370
      %v1882 = vmul.f32 %v1866, %v1372
      %v1883 = vmul.f32 %v1867, %v1374
      %v1884 = vmul.f32 %v1868, %v1376
      %v1885 = vmul.f32 %v1869, %v1378
      %v1886 = vmul.f32 %v1870, %v1380
      %v1887 = vmul.f32 %v1871, %v1382
      %v1888 = vmul.f32 %v1872, %v1384
      %v1889 = vmul.f32 %v1873, %v1386
      %v1890 = vmul.f32 %v1874, %v1388
      %v1891 = vmul.f32 %v1875, %v1390
      %v1892 = vmul.f32 %v1876, %v1392
      %v1893 = vmul.f32 %v1877, %v1394
      %v1894 = vmul.f32 %v1878, %v1396
      %v1895 = vmul.f32 %v1879, %v1398
      %v1896 = vadd.f32 %v1848, %v1880
      %v1897 = vadd.f32 %v1849, %v1881
      %v1898 = vadd.f32 %v1850, %v1882
      %v1899 = vadd.f32 %v1851, %v1883
      %v1900 = vadd.f32 %v1852, %v1884
      %v1901 = vadd.f32 %v1853, %v1885
      %v1902 = vadd.f32 %v1854, %v1886
      %v1903 = vadd.f32 %v1855, %v1887
      %v1904 = vadd.f32 %v1856, %v1888
      %v1905 = vadd.f32 %v1857, %v1889
      %v1906 = vadd.f32 %v1858, %v1890
      %v1907 = vadd.f32 %v1859, %v1891
      %v1908 = vadd.f32 %v1860, %v1892
      %v1909 = vadd.f32 %v1861, %v1893
      %v1910 = vadd.f32 %v1862, %v1894
      %v1911 = vadd.f32 %v1863, %v1895
      %v1912 = vpack.c.bf16 %v1897, %v1896
      %v1913 = vpack.c.bf16 %v1899, %v1898
      %v1914 = vpack.c.bf16 %v1901, %v1900
      %v1915 = vpack.c.bf16 %v1903, %v1902
      %v1916 = vpack.c.bf16 %v1905, %v1904
      %v1917 = vpack.c.bf16 %v1907, %v1906
      %v1918 = vpack.c.bf16 %v1909, %v1908
      %v1919 = vpack.c.bf16 %v1911, %v1910
      %v1920 = vld [vmem:[%s4] sm:$0xf]
      %v1921 = vld [vmem:[%s4 + $0x4] sm:$0xf]
      %v1922 = vld [vmem:[%s4 + $0x8] sm:$0xf]
      %v1923 = vld [vmem:[%s4 + $0xc] sm:$0xf]
      %v1924 = vld [vmem:[%s4 + $0x10] sm:$0xf]
      %v1925 = vld [vmem:[%s4 + $0x14] sm:$0xf]
      %v1926 = vld [vmem:[%s4 + $0x18] sm:$0xf]
      %v1927 = vld [vmem:[%s4 + $0x1c] sm:$0xf]
      %v1928 = vld [vmem:[%s4 + $0x20] sm:$0xf]
      %v1929 = vld [vmem:[%s4 + $0x24] sm:$0xf]
      %v1930 = vld [vmem:[%s4 + $0x28] sm:$0xf]
      %v1931 = vld [vmem:[%s4 + $0x2c] sm:$0xf]
      %v1932 = vld [vmem:[%s4 + $0x30] sm:$0xf]
      %v1933 = vld [vmem:[%s4 + $0x34] sm:$0xf]
      %v1934 = vld [vmem:[%s4 + $0x38] sm:$0xf]
      %v1935 = vld [vmem:[%s4 + $0x3c] sm:$0xf]
      %v1936 = vld [vmem:[%s5] sm:$0x1]
      %v1938 = vlaneseq
      %v1939 = vshrl.u32 %v1938, 7
      %v1940 = vsub.s32 0, %v1939
      %v1941 = vrot.slane %v1936, %v1940
      %v1959 = vunpack.c.l.b16 %v1920
      %v1960 = vunpack.c.l.b16 %v1921
      %v1961 = vunpack.c.l.b16 %v1922
      %v1962 = vunpack.c.l.b16 %v1923
      %v1963 = vunpack.c.l.b16 %v1924
      %v1964 = vunpack.c.l.b16 %v1925
      %v1965 = vunpack.c.l.b16 %v1926
      %v1966 = vunpack.c.l.b16 %v1927
      %v1967 = vunpack.c.l.b16 %v1928
      %v1968 = vunpack.c.l.b16 %v1929
      %v1969 = vunpack.c.l.b16 %v1930
      %v1970 = vunpack.c.l.b16 %v1931
      %v1971 = vunpack.c.l.b16 %v1932
      %v1972 = vunpack.c.l.b16 %v1933
      %v1973 = vunpack.c.l.b16 %v1934
      %v1974 = vunpack.c.l.b16 %v1935
      %v1975 = vpack.c.b16 %v1960, %v1959
      %v1976 = vpack.c.b16 %v1962, %v1961
      %v1977 = vpack.c.b16 %v1964, %v1963
      %v1978 = vpack.c.b16 %v1966, %v1965
      %v1979 = vpack.c.b16 %v1968, %v1967
      %v1980 = vpack.c.b16 %v1970, %v1969
      %v1981 = vpack.c.b16 %v1972, %v1971
      %v1982 = vpack.c.b16 %v1974, %v1973
      %1991 = vmatprep.subr.bf16.mxu0 0
      %1992 = vmatpush1.bf16.msra.mxu0 %v1975
      %1993 = vmatprep.subr.bf16.mxu0 0
      %1994 = vmatpush1.bf16.msra.mxu0 %v1976
      %1995 = vmatprep.subr.bf16.mxu0 0
      %1996 = vmatpush1.bf16.msra.mxu0 %v1977
      %1997 = vmatprep.subr.bf16.mxu0 0
      %1998 = vmatpush1.bf16.msra.mxu0 %v1978
      %1999 = vmatprep.subr.bf16.mxu0 0
      %2000 = vmatpush1.bf16.msra.mxu0 %v1979
      %2001 = vmatprep.subr.bf16.mxu0 0
      %2002 = vmatpush1.bf16.msra.mxu0 %v1980
      %2003 = vmatprep.subr.bf16.mxu0 0
      %2004 = vmatpush1.bf16.msra.mxu0 %v1981
      %2005 = vmatprep.subr.bf16.mxu0 0
      %2006 = vmatpush1.bf16.msra.mxu0 %v1982
      %2007 = vmatprep.subr.bf16.mxu0 0
      %2008 = vmatpush1.bf16.msra.mxu0 0
      %2009 = vmatprep.subr.bf16.mxu0 0
      %2010 = vmatpush1.bf16.msra.mxu0 0
      %2011 = vmatprep.subr.bf16.mxu0 0
      %2012 = vmatpush1.bf16.msra.mxu0 0
      %2013 = vmatprep.subr.bf16.mxu0 0
      %2014 = vmatpush1.bf16.msra.mxu0 0
      %2015 = vmatprep.subr.bf16.mxu0 0
      %2016 = vmatpush1.bf16.msra.mxu0 0
      %2017 = vmatprep.subr.bf16.mxu0 0
      %2018 = vmatpush1.bf16.msra.mxu0 0
      %2019 = vmatprep.subr.bf16.mxu0 0
      %2020 = vmatpush1.bf16.msra.mxu0 0
      %2021 = vmatprep.subr.bf16.mxu0 0
      %2022 = vmatpush1.bf16.msra.mxu0 0
      %2023 = vmatprep.mubr.bf16.mxu0 0
      %2024 = vmatmul.mubr.bf16.gmra.mrb[0].mxu0 %v1912
      %v2025 = vpop.f32.mrb[0].mxu0
      %v2026 = vadd.f32 %v1941, %v2025
      %v2027 = vpop.f32.mrb[0].mxu0
      %v2028 = vpop.f32.mrb[0].mxu0
      %v2029 = vadd.f32 %v1941, %v2028
      %v2030 = vpop.f32.mrb[0].mxu0
      %2031 = vmatprep.mubr.bf16.mxu0 0
      %2032 = vmatmul.mubr.bf16.gmra.mrb[0].mxu0 %v1913
      %v2033 = vpop.f32.mrb[0].mxu0
      %v2034 = vadd.f32 %v1941, %v2033
      %v2035 = vpop.f32.mrb[0].mxu0
      %v2036 = vpop.f32.mrb[0].mxu0
      %v2037 = vadd.f32 %v1941, %v2036
      %v2038 = vpop.f32.mrb[0].mxu0
      %2039 = vmatprep.mubr.bf16.mxu0 0
      %2040 = vmatmul.mubr.bf16.gmra.mrb[0].mxu0 %v1914
      %v2041 = vpop.f32.mrb[0].mxu0
      %v2042 = vadd.f32 %v1941, %v2041
      %v2043 = vpop.f32.mrb[0].mxu0
      %v2044 = vpop.f32.mrb[0].mxu0
      %v2045 = vadd.f32 %v1941, %v2044
      %v2046 = vpop.f32.mrb[0].mxu0
      %2047 = vmatprep.mubr.bf16.mxu0 0
      %2048 = vmatmul.mubr.bf16.gmra.mrb[0].mxu0 %v1915
      %v2049 = vpop.f32.mrb[0].mxu0
      %v2050 = vadd.f32 %v1941, %v2049
      %v2051 = vpop.f32.mrb[0].mxu0
      %v2052 = vpop.f32.mrb[0].mxu0
      %v2053 = vadd.f32 %v1941, %v2052
      %v2054 = vpop.f32.mrb[0].mxu0
      %2055 = vmatprep.mubr.bf16.mxu0 0
      %2056 = vmatmul.mubr.bf16.gmra.mrb[0].mxu0 %v1916
      %v2057 = vpop.f32.mrb[0].mxu0
      %v2058 = vadd.f32 %v1941, %v2057
      %v2059 = vpop.f32.mrb[0].mxu0
      %v2060 = vpop.f32.mrb[0].mxu0
      %v2061 = vadd.f32 %v1941, %v2060
      %v2062 = vpop.f32.mrb[0].mxu0
      %2063 = vmatprep.mubr.bf16.mxu0 0
      %2064 = vmatmul.mubr.bf16.gmra.mrb[0].mxu0 %v1917
      %v2065 = vpop.f32.mrb[0].mxu0
      %v2066 = vadd.f32 %v1941, %v2065
      %v2067 = vpop.f32.mrb[0].mxu0
      %v2068 = vpop.f32.mrb[0].mxu0
      %v2069 = vadd.f32 %v1941, %v2068
      %v2070 = vpop.f32.mrb[0].mxu0
      %2071 = vmatprep.mubr.bf16.mxu0 0
      %2072 = vmatmul.mubr.bf16.gmra.mrb[0].mxu0 %v1918
      %v2073 = vpop.f32.mrb[0].mxu0
      %v2074 = vadd.f32 %v1941, %v2073
      %v2075 = vpop.f32.mrb[0].mxu0
      %v2076 = vpop.f32.mrb[0].mxu0
      %v2077 = vadd.f32 %v1941, %v2076
      %v2078 = vpop.f32.mrb[0].mxu0
      %2079 = vmatprep.mubr.bf16.mxu0 0
      %2080 = vmatmul.mubr.bf16.gmra.mrb[0].mxu0 %v1919
      %v2081 = vpop.f32.mrb[0].mxu0
      %v2082 = vadd.f32 %v1941, %v2081
      %v2083 = vpop.f32.mrb[0].mxu0
      %v2084 = vpop.f32.mrb[0].mxu0
      %v2085 = vadd.f32 %v1941, %v2084
      %v2086 = vpop.f32.mrb[0].mxu0
      %2087 = vdwg.mxu0
      %v2088 = vunpack.c.l.bf16 %v418
      %v2089 = vunpack.c.l.bf16 %v419
      %v2090 = vunpack.c.l.bf16 %v420
      %v2091 = vunpack.c.l.bf16 %v421
      %v2092 = vunpack.c.l.bf16 %v422
      %v2093 = vunpack.c.l.bf16 %v423
      %v2094 = vunpack.c.l.bf16 %v424
      %v2095 = vunpack.c.l.bf16 %v425
      %v2096 = vunpack.c.l.bf16 %v426
      %v2097 = vunpack.c.l.bf16 %v427
      %v2098 = vunpack.c.l.bf16 %v428
      %v2099 = vunpack.c.l.bf16 %v429
      %v2100 = vunpack.c.l.bf16 %v430
      %v2101 = vunpack.c.l.bf16 %v431
      %v2102 = vunpack.c.l.bf16 %v432
      %v2103 = vunpack.c.l.bf16 %v433
      %v2104 = vadd.f32 %v2026, %v2088
      %v2105 = vadd.f32 %v2029, %v2089
      %v2106 = vadd.f32 %v2034, %v2090
      %v2107 = vadd.f32 %v2037, %v2091
      %v2108 = vadd.f32 %v2042, %v2092
      %v2109 = vadd.f32 %v2045, %v2093
      %v2110 = vadd.f32 %v2050, %v2094
      %v2111 = vadd.f32 %v2053, %v2095
      %v2112 = vadd.f32 %v2058, %v2096
      %v2113 = vadd.f32 %v2061, %v2097
      %v2114 = vadd.f32 %v2066, %v2098
      %v2115 = vadd.f32 %v2069, %v2099
      %v2116 = vadd.f32 %v2074, %v2100
      %v2117 = vadd.f32 %v2077, %v2101
      %v2118 = vadd.f32 %v2082, %v2102
      %v2119 = vadd.f32 %v2085, %v2103
      %v2120 = vld [vmem:[%s6] sm:$0x1]
      %v2122 = vlaneseq
      %v2123 = vshrl.u32 %v2122, 7
      %v2124 = vsub.s32 0, %v2123
      %v2125 = vrot.slane %v2120, %v2124
      %v2127 = vmul.f32 %v2104, %v2125
      %v2128 = vmul.f32 %v2105, %v2125
      %v2129 = vmul.f32 %v2106, %v2125
      %v2130 = vmul.f32 %v2107, %v2125
      %v2131 = vmul.f32 %v2108, %v2125
      %v2132 = vmul.f32 %v2109, %v2125
      %v2133 = vmul.f32 %v2110, %v2125
      %v2134 = vmul.f32 %v2111, %v2125
      %v2135 = vmul.f32 %v2112, %v2125
      %v2136 = vmul.f32 %v2113, %v2125
      %v2137 = vmul.f32 %v2114, %v2125
      %v2138 = vmul.f32 %v2115, %v2125
      %v2139 = vmul.f32 %v2116, %v2125
      %v2140 = vmul.f32 %v2117, %v2125
      %v2141 = vmul.f32 %v2118, %v2125
      %v2142 = vmul.f32 %v2119, %v2125
      %v2143 = vld [vmem:[%s7] sm:$0x1]
      %v2145 = vlaneseq
      %v2146 = vshrl.u32 %v2145, 7
      %v2147 = vsub.s32 0, %v2146
      %v2148 = vrot.slane %v2143, %v2147
      %v2150 = vadd.f32 %v2127, %v2148
      %v2151 = vadd.f32 %v2128, %v2148
      %v2152 = vadd.f32 %v2129, %v2148
      %v2153 = vadd.f32 %v2130, %v2148
      %v2154 = vadd.f32 %v2131, %v2148
      %v2155 = vadd.f32 %v2132, %v2148
      %v2156 = vadd.f32 %v2133, %v2148
      %v2157 = vadd.f32 %v2134, %v2148
      %v2158 = vadd.f32 %v2135, %v2148
      %v2159 = vadd.f32 %v2136, %v2148
      %v2160 = vadd.f32 %v2137, %v2148
      %v2161 = vadd.f32 %v2138, %v2148
      %v2162 = vadd.f32 %v2139, %v2148
      %v2163 = vadd.f32 %v2140, %v2148
      %v2164 = vadd.f32 %v2141, %v2148
      %v2165 = vadd.f32 %v2142, %v2148
      %v2166 = vmax.f32 %v2150, 0.0
      %v2167 = vmax.f32 %v2151, 0.0
      %v2168 = vmax.f32 %v2152, 0.0
      %v2169 = vmax.f32 %v2153, 0.0
      %v2170 = vmax.f32 %v2154, 0.0
      %v2171 = vmax.f32 %v2155, 0.0
      %v2172 = vmax.f32 %v2156, 0.0
      %v2173 = vmax.f32 %v2157, 0.0
      %v2174 = vmax.f32 %v2158, 0.0
      %v2175 = vmax.f32 %v2159, 0.0
      %v2176 = vmax.f32 %v2160, 0.0
      %v2177 = vmax.f32 %v2161, 0.0
      %v2178 = vmax.f32 %v2162, 0.0
      %v2179 = vmax.f32 %v2163, 0.0
      %v2180 = vmax.f32 %v2164, 0.0
      %v2181 = vmax.f32 %v2165, 0.0
      %v2182 = vpack.c.bf16 %v2167, %v2166
      %v2183 = vpack.c.bf16 %v2169, %v2168
      %v2184 = vpack.c.bf16 %v2171, %v2170
      %v2185 = vpack.c.bf16 %v2173, %v2172
      %v2186 = vpack.c.bf16 %v2175, %v2174
      %v2187 = vpack.c.bf16 %v2177, %v2176
      %v2188 = vpack.c.bf16 %v2179, %v2178
      %v2189 = vpack.c.bf16 %v2181, %v2180
      %v2190 = vld [vmem:[%s8] sm:$0xf]
      %v2191 = vld [vmem:[%s8 + $0x4] sm:$0xf]
      %v2192 = vld [vmem:[%s8 + $0x8] sm:$0xf]
      %v2193 = vld [vmem:[%s8 + $0xc] sm:$0xf]
      %v2194 = vld [vmem:[%s8 + $0x10] sm:$0xf]
      %v2195 = vld [vmem:[%s8 + $0x14] sm:$0xf]
      %v2196 = vld [vmem:[%s8 + $0x18] sm:$0xf]
      %v2197 = vld [vmem:[%s8 + $0x1c] sm:$0xf]
      %v2198 = vld [vmem:[%s8 + $0x20] sm:$0xf]
      %v2199 = vld [vmem:[%s8 + $0x24] sm:$0xf]
      %v2200 = vld [vmem:[%s8 + $0x28] sm:$0xf]
      %v2201 = vld [vmem:[%s8 + $0x2c] sm:$0xf]
      %v2202 = vld [vmem:[%s8 + $0x30] sm:$0xf]
      %v2203 = vld [vmem:[%s8 + $0x34] sm:$0xf]
      %v2204 = vld [vmem:[%s8 + $0x38] sm:$0xf]
      %v2205 = vld [vmem:[%s8 + $0x3c] sm:$0xf]
      %v2206 = vld [vmem:[%s9] sm:$0x1]
      %v2208 = vlaneseq
      %v2209 = vshrl.u32 %v2208, 7
      %v2210 = vsub.s32 0, %v2209
      %v2211 = vrot.slane %v2206, %v2210
      %v2229 = vunpack.c.l.b16 %v2190
      %v2230 = vunpack.c.l.b16 %v2191
      %v2231 = vunpack.c.l.b16 %v2192
      %v2232 = vunpack.c.l.b16 %v2193
      %v2233 = vunpack.c.l.b16 %v2194
      %v2234 = vunpack.c.l.b16 %v2195
      %v2235 = vunpack.c.l.b16 %v2196
      %v2236 = vunpack.c.l.b16 %v2197
      %v2237 = vunpack.c.l.b16 %v2198
      %v2238 = vunpack.c.l.b16 %v2199
      %v2239 = vunpack.c.l.b16 %v2200
      %v2240 = vunpack.c.l.b16 %v2201
      %v2241 = vunpack.c.l.b16 %v2202
      %v2242 = vunpack.c.l.b16 %v2203
      %v2243 = vunpack.c.l.b16 %v2204
      %v2244 = vunpack.c.l.b16 %v2205
      %v2245 = vpack.c.b16 %v2230, %v2229
      %v2246 = vpack.c.b16 %v2232, %v2231
      %v2247 = vpack.c.b16 %v2234, %v2233
      %v2248 = vpack.c.b16 %v2236, %v2235
      %v2249 = vpack.c.b16 %v2238, %v2237
      %v2250 = vpack.c.b16 %v2240, %v2239
      %v2251 = vpack.c.b16 %v2242, %v2241
      %v2252 = vpack.c.b16 %v2244, %v2243
      %2261 = vmatprep.subr.bf16.mxu0 0
      %2262 = vmatpush1.bf16.msra.mxu0 %v2245
      %2263 = vmatprep.subr.bf16.mxu0 0
      %2264 = vmatpush1.bf16.msra.mxu0 %v2246
      %2265 = vmatprep.subr.bf16.mxu0 0
      %2266 = vmatpush1.bf16.msra.mxu0 %v2247
      %2267 = vmatprep.subr.bf16.mxu0 0
      %2268 = vmatpush1.bf16.msra.mxu0 %v2248
      %2269 = vmatprep.subr.bf16.mxu0 0
      %2270 = vmatpush1.bf16.msra.mxu0 %v2249
      %2271 = vmatprep.subr.bf16.mxu0 0
      %2272 = vmatpush1.bf16.msra.mxu0 %v2250
      %2273 = vmatprep.subr.bf16.mxu0 0
      %2274 = vmatpush1.bf16.msra.mxu0 %v2251
      %2275 = vmatprep.subr.bf16.mxu0 0
      %2276 = vmatpush1.bf16.msra.mxu0 %v2252
      %2277 = vmatprep.subr.bf16.mxu0 0
      %2278 = vmatpush1.bf16.msra.mxu0 0
      %2279 = vmatprep.subr.bf16.mxu0 0
      %2280 = vmatpush1.bf16.msra.mxu0 0
      %2281 = vmatprep.subr.bf16.mxu0 0
      %2282 = vmatpush1.bf16.msra.mxu0 0
      %2283 = vmatprep.subr.bf16.mxu0 0
      %2284 = vmatpush1.bf16.msra.mxu0 0
      %2285 = vmatprep.subr.bf16.mxu0 0
      %2286 = vmatpush1.bf16.msra.mxu0 0
      %2287 = vmatprep.subr.bf16.mxu0 0
      %2288 = vmatpush1.bf16.msra.mxu0 0
      %2289 = vmatprep.subr.bf16.mxu0 0
      %2290 = vmatpush1.bf16.msra.mxu0 0
      %2291 = vmatprep.subr.bf16.mxu0 0
      %2292 = vmatpush1.bf16.msra.mxu0 0
      %2293 = vmatprep.mubr.bf16.mxu0 0
      %2294 = vmatmul.mubr.bf16.gmra.mrb[0].mxu0 %v2182
      %v2295 = vpop.f32.mrb[0].mxu0
      %v2296 = vadd.f32 %v2211, %v2295
      %v2297 = vpop.f32.mrb[0].mxu0
      %v2298 = vpop.f32.mrb[0].mxu0
      %v2299 = vadd.f32 %v2211, %v2298
      %v2300 = vpop.f32.mrb[0].mxu0
      %2301 = vmatprep.mubr.bf16.mxu0 0
      %2302 = vmatmul.mubr.bf16.gmra.mrb[0].mxu0 %v2183
      %v2303 = vpop.f32.mrb[0].mxu0
      %v2304 = vadd.f32 %v2211, %v2303
      %v2305 = vpop.f32.mrb[0].mxu0
      %v2306 = vpop.f32.mrb[0].mxu0
      %v2307 = vadd.f32 %v2211, %v2306
      %v2308 = vpop.f32.mrb[0].mxu0
      %2309 = vmatprep.mubr.bf16.mxu0 0
      %2310 = vmatmul.mubr.bf16.gmra.mrb[0].mxu0 %v2184
      %v2311 = vpop.f32.mrb[0].mxu0
      %v2312 = vadd.f32 %v2211, %v2311
      %v2313 = vpop.f32.mrb[0].mxu0
      %v2314 = vpop.f32.mrb[0].mxu0
      %v2315 = vadd.f32 %v2211, %v2314
      %v2316 = vpop.f32.mrb[0].mxu0
      %2317 = vmatprep.mubr.bf16.mxu0 0
      %2318 = vmatmul.mubr.bf16.gmra.mrb[0].mxu0 %v2185
      %v2319 = vpop.f32.mrb[0].mxu0
      %v2320 = vadd.f32 %v2211, %v2319
      %v2321 = vpop.f32.mrb[0].mxu0
      %v2322 = vpop.f32.mrb[0].mxu0
      %v2323 = vadd.f32 %v2211, %v2322
      %v2324 = vpop.f32.mrb[0].mxu0
      %2325 = vmatprep.mubr.bf16.mxu0 0
      %2326 = vmatmul.mubr.bf16.gmra.mrb[0].mxu0 %v2186
      %v2327 = vpop.f32.mrb[0].mxu0
      %v2328 = vadd.f32 %v2211, %v2327
      %v2329 = vpop.f32.mrb[0].mxu0
      %v2330 = vpop.f32.mrb[0].mxu0
      %v2331 = vadd.f32 %v2211, %v2330
      %v2332 = vpop.f32.mrb[0].mxu0
      %2333 = vmatprep.mubr.bf16.mxu0 0
      %2334 = vmatmul.mubr.bf16.gmra.mrb[0].mxu0 %v2187
      %v2335 = vpop.f32.mrb[0].mxu0
      %v2336 = vadd.f32 %v2211, %v2335
      %v2337 = vpop.f32.mrb[0].mxu0
      %v2338 = vpop.f32.mrb[0].mxu0
      %v2339 = vadd.f32 %v2211, %v2338
      %v2340 = vpop.f32.mrb[0].mxu0
      %2341 = vmatprep.mubr.bf16.mxu0 0
      %2342 = vmatmul.mubr.bf16.gmra.mrb[0].mxu0 %v2188
      %v2343 = vpop.f32.mrb[0].mxu0
      %v2344 = vadd.f32 %v2211, %v2343
      %v2345 = vpop.f32.mrb[0].mxu0
      %v2346 = vpop.f32.mrb[0].mxu0
      %v2347 = vadd.f32 %v2211, %v2346
      %v2348 = vpop.f32.mrb[0].mxu0
      %2349 = vmatprep.mubr.bf16.mxu0 0
      %2350 = vmatmul.mubr.bf16.gmra.mrb[0].mxu0 %v2189
      %v2351 = vpop.f32.mrb[0].mxu0
      %v2352 = vadd.f32 %v2211, %v2351
      %v2353 = vpop.f32.mrb[0].mxu0
      %v2354 = vpop.f32.mrb[0].mxu0
      %v2355 = vadd.f32 %v2211, %v2354
      %v2356 = vpop.f32.mrb[0].mxu0
      %2357 = vdwg.mxu0
      %v2358 = vmax.f32 %v2296, 0.0
      %v2359 = vmax.f32 %v2299, 0.0
      %v2360 = vmax.f32 %v2304, 0.0
      %v2361 = vmax.f32 %v2307, 0.0
      %v2362 = vmax.f32 %v2312, 0.0
      %v2363 = vmax.f32 %v2315, 0.0
      %v2364 = vmax.f32 %v2320, 0.0
      %v2365 = vmax.f32 %v2323, 0.0
      %v2366 = vmax.f32 %v2328, 0.0
      %v2367 = vmax.f32 %v2331, 0.0
      %v2368 = vmax.f32 %v2336, 0.0
      %v2369 = vmax.f32 %v2339, 0.0
      %v2370 = vmax.f32 %v2344, 0.0
      %v2371 = vmax.f32 %v2347, 0.0
      %v2372 = vmax.f32 %v2352, 0.0
      %v2373 = vmax.f32 %v2355, 0.0
      %v2374 = vpack.c.bf16 %v2359, %v2358
      %v2375 = vpack.c.bf16 %v2361, %v2360
      %v2376 = vpack.c.bf16 %v2363, %v2362
      %v2377 = vpack.c.bf16 %v2365, %v2364
      %v2378 = vpack.c.bf16 %v2367, %v2366
      %v2379 = vpack.c.bf16 %v2369, %v2368
      %v2380 = vpack.c.bf16 %v2371, %v2370
      %v2381 = vpack.c.bf16 %v2373, %v2372
      %v2382 = vld [vmem:[%s10] sm:$0xf]
      %v2383 = vld [vmem:[%s10 + $0x4] sm:$0xf]
      %v2384 = vld [vmem:[%s10 + $0x8] sm:$0xf]
      %v2385 = vld [vmem:[%s10 + $0xc] sm:$0xf]
      %v2386 = vld [vmem:[%s11] sm:$0x1]
      %v2388 = vlaneseq
      %v2389 = vshrl.u32 %v2388, 7
      %v2390 = vsub.s32 0, %v2389
      %v2391 = vrot.slane %v2386, %v2390
      %v2397 = vunpack.c.l.b16 %v2382
      %v2398 = vunpack.c.l.b16 %v2383
      %v2399 = vunpack.c.l.b16 %v2384
      %v2400 = vunpack.c.l.b16 %v2385
      %v2401 = vpack.c.b16 %v2398, %v2397
      %v2402 = vpack.c.b16 %v2400, %v2399
      %vm2405 = vcmask 261120
      %v2407 = vsel %vm2405, %v2374, 0
      %v2410 = vsel %vm2405, %v2375, 0
      %v2413 = vsel %vm2405, %v2376, 0
      %v2416 = vsel %vm2405, %v2377, 0
      %v2419 = vsel %vm2405, %v2378, 0
      %v2422 = vsel %vm2405, %v2379, 0
      %v2425 = vsel %vm2405, %v2380, 0
      %v2428 = vsel %vm2405, %v2381, 0
      %2430 = vmatprep.subr.bf16.mxu0 0
      %2431 = vmatpush1.bf16.msra.mxu0 %v2401
      %2432 = vmatprep.subr.bf16.mxu0 0
      %2433 = vmatpush1.bf16.msra.mxu0 %v2402
      %2434 = vmatprep.subr.bf16.mxu0 0
      %2435 = vmatpush1.bf16.msra.mxu0 0
      %2436 = vmatprep.subr.bf16.mxu0 0
      %2437 = vmatpush1.bf16.msra.mxu0 0
      %2438 = vmatprep.subr.bf16.mxu0 0
      %2439 = vmatpush1.bf16.msra.mxu0 0
      %2440 = vmatprep.subr.bf16.mxu0 0
      %2441 = vmatpush1.bf16.msra.mxu0 0
      %2442 = vmatprep.subr.bf16.mxu0 0
      %2443 = vmatpush1.bf16.msra.mxu0 0
      %2444 = vmatprep.subr.bf16.mxu0 0
      %2445 = vmatpush1.bf16.msra.mxu0 0
      %2446 = vmatprep.subr.bf16.mxu0 0
      %2447 = vmatpush1.bf16.msra.mxu0 0
      %2448 = vmatprep.subr.bf16.mxu0 0
      %2449 = vmatpush1.bf16.msra.mxu0 0
      %2450 = vmatprep.subr.bf16.mxu0 0
      %2451 = vmatpush1.bf16.msra.mxu0 0
      %2452 = vmatprep.subr.bf16.mxu0 0
      %2453 = vmatpush1.bf16.msra.mxu0 0
      %2454 = vmatprep.subr.bf16.mxu0 0
      %2455 = vmatpush1.bf16.msra.mxu0 0
      %2456 = vmatprep.subr.bf16.mxu0 0
      %2457 = vmatpush1.bf16.msra.mxu0 0
      %2458 = vmatprep.subr.bf16.mxu0 0
      %2459 = vmatpush1.bf16.msra.mxu0 0
      %2460 = vmatprep.subr.bf16.mxu0 0
      %2461 = vmatpush1.bf16.msra.mxu0 0
      %2462 = vmatprep.mubr.bf16.mxu0 0
      %2463 = vmatmul.mubr.bf16.gmra.mrb[0].mxu0 %v2407
      %v2464 = vpop.f32.mrb[0].mxu0
      %v2465 = vadd.f32 %v2391, %v2464
      %v2466 = vpop.f32.mrb[0].mxu0
      %v2467 = vpop.f32.mrb[0].mxu0
      %v2468 = vadd.f32 %v2391, %v2467
      %v2469 = vpop.f32.mrb[0].mxu0
      %2470 = vmatprep.mubr.bf16.mxu0 0
      %2471 = vmatmul.mubr.bf16.gmra.mrb[0].mxu0 %v2410
      %v2472 = vpop.f32.mrb[0].mxu0
      %v2473 = vadd.f32 %v2391, %v2472
      %v2474 = vpop.f32.mrb[0].mxu0
      %v2475 = vpop.f32.mrb[0].mxu0
      %v2476 = vadd.f32 %v2391, %v2475
      %v2477 = vpop.f32.mrb[0].mxu0
      %2478 = vmatprep.mubr.bf16.mxu0 0
      %2479 = vmatmul.mubr.bf16.gmra.mrb[0].mxu0 %v2413
      %v2480 = vpop.f32.mrb[0].mxu0
      %v2481 = vadd.f32 %v2391, %v2480
      %v2482 = vpop.f32.mrb[0].mxu0
      %v2483 = vpop.f32.mrb[0].mxu0
      %v2484 = vadd.f32 %v2391, %v2483
      %v2485 = vpop.f32.mrb[0].mxu0
      %2486 = vmatprep.mubr.bf16.mxu0 0
      %2487 = vmatmul.mubr.bf16.gmra.mrb[0].mxu0 %v2416
      %v2488 = vpop.f32.mrb[0].mxu0
      %v2489 = vadd.f32 %v2391, %v2488
      %v2490 = vpop.f32.mrb[0].mxu0
      %v2491 = vpop.f32.mrb[0].mxu0
      %v2492 = vadd.f32 %v2391, %v2491
      %v2493 = vpop.f32.mrb[0].mxu0
      %2494 = vmatprep.mubr.bf16.mxu0 0
      %2495 = vmatmul.mubr.bf16.gmra.mrb[0].mxu0 %v2419
      %v2496 = vpop.f32.mrb[0].mxu0
      %v2497 = vadd.f32 %v2391, %v2496
      %v2498 = vpop.f32.mrb[0].mxu0
      %v2499 = vpop.f32.mrb[0].mxu0
      %v2500 = vadd.f32 %v2391, %v2499
      %v2501 = vpop.f32.mrb[0].mxu0
      %2502 = vmatprep.mubr.bf16.mxu0 0
      %2503 = vmatmul.mubr.bf16.gmra.mrb[0].mxu0 %v2422
      %v2504 = vpop.f32.mrb[0].mxu0
      %v2505 = vadd.f32 %v2391, %v2504
      %v2506 = vpop.f32.mrb[0].mxu0
      %v2507 = vpop.f32.mrb[0].mxu0
      %v2508 = vadd.f32 %v2391, %v2507
      %v2509 = vpop.f32.mrb[0].mxu0
      %2510 = vmatprep.mubr.bf16.mxu0 0
      %2511 = vmatmul.mubr.bf16.gmra.mrb[0].mxu0 %v2425
      %v2512 = vpop.f32.mrb[0].mxu0
      %v2513 = vadd.f32 %v2391, %v2512
      %v2514 = vpop.f32.mrb[0].mxu0
      %v2515 = vpop.f32.mrb[0].mxu0
      %v2516 = vadd.f32 %v2391, %v2515
      %v2517 = vpop.f32.mrb[0].mxu0
      %2518 = vmatprep.mubr.bf16.mxu0 0
      %2519 = vmatmul.mubr.bf16.gmra.mrb[0].mxu0 %v2428
      %v2520 = vpop.f32.mrb[0].mxu0
      %v2521 = vadd.f32 %v2391, %v2520
      %v2522 = vpop.f32.mrb[0].mxu0
      %v2523 = vpop.f32.mrb[0].mxu0
      %v2524 = vadd.f32 %v2391, %v2523
      %v2525 = vpop.f32.mrb[0].mxu0
      %2526 = vdwg.mxu0
      %2527 = vst [vmem:[%s415] sm:$0xff] %v2465
      %2528 = vst [vmem:[%s415 + $0x8] sm:$0xff] %v2468
      %2529 = vst [vmem:[%s415 + $0x10] sm:$0xff] %v2473
      %2530 = vst [vmem:[%s415 + $0x18] sm:$0xff] %v2476
      %2531 = vst [vmem:[%s415 + $0x20] sm:$0xff] %v2481
      %2532 = vst [vmem:[%s415 + $0x28] sm:$0xff] %v2484
      %2533 = vst [vmem:[%s415 + $0x30] sm:$0xff] %v2489
      %2534 = vst [vmem:[%s415 + $0x38] sm:$0xff] %v2492
      %2535 = vst [vmem:[%s415 + $0x40] sm:$0xff] %v2497
      %2536 = vst [vmem:[%s415 + $0x48] sm:$0xff] %v2500
      %2537 = vst [vmem:[%s415 + $0x50] sm:$0xff] %v2505
      %2538 = vst [vmem:[%s415 + $0x58] sm:$0xff] %v2508
      %2539 = vst [vmem:[%s415 + $0x60] sm:$0xff] %v2513
      %2540 = vst [vmem:[%s415 + $0x68] sm:$0xff] %v2516
      %2541 = vst [vmem:[%s415 + $0x70] sm:$0xff] %v2521
      %2542 = vst [vmem:[%s415 + $0x78] sm:$0xff] %v2524
      %s2543 = smul.u32 16, %s23
      %p2544 = scmp.lt.s32.totalorder %s2543, 31
      %s2545 = scalar_select %p2544, %s2543, 31
      %s2546 = smul.addr %s2545, 8
      %s2547 = scalar_lea.vmem %s12, %s2546
      // Predicated region
      $region69: #{cross_gat_forward.1} parent=67 // pred_check
        %p2548 = pneg %p298
      $region70: #{cross_gat_forward.1} parent=67 // pred_check_branch
        %2550 = sbr.rel (%p2548) target = $region72
      $region71: #{cross_gat_forward.1} parent=67 // pred_region
        %s2551 = smul.u32 16, %s23
      $region72: #{cross_gat_forward.1} parent=67 // pred_fallthru
        _
    $region68: #{cross_gat_forward.1} parent=5 // pred_fallthru
      _
    %p2552 = scmp.le.s32.totalorder 2, %s18
    // Predicated region
    $region73: #{cross_gat_forward.1} parent=5 // pred_check
      %p2553 = pneg %p2552
    $region74: #{cross_gat_forward.1} parent=5 // pred_check_branch
      %2555 = sbr.rel (%p2553) target = $region76
    $region75: #{cross_gat_forward.1} parent=5 // pred_region
      %s2556 = ssub.s32 %s18, 2
      // Predicated region
      $region77: #{cross_gat_forward.1} parent=75 // pred_check
        %p2557 = pneg %p304
      $region78: #{cross_gat_forward.1} parent=75 // pred_check_branch
        %2559 = sbr.rel (%p2557) target = $region80
      $region79: #{cross_gat_forward.1} parent=75 // pred_region
        %s2560 = smul.u32 16, %s24
        %p2561 = scmp.lt.s32.totalorder %s2560, 31
        %s2562 = scalar_select %p2561, %s2560, 31
        %s2563 = smul.addr %s2562, 8
        %s2564 = scalar_lea.vmem %s12, %s2563
      $region80: #{cross_gat_forward.1} parent=75 // pred_fallthru
        _
    $region76: #{cross_gat_forward.1} parent=5 // pred_fallthru
      _
  $region6: #{cross_gat_forward.1} parent=0 // loop_footer
    %s22 = sadd.s32 1, %s18
  $region7: #{cross_gat_forward.1} parent=0 // loop_footer_branch
    %17 = sbr.rel target = $region3
  $region8: #{cross_gat_forward.1} parent=0 // loop_exit
    _

</llo_original>
